<compile_context>
chip_gen: v7x
topology: tpu7x:2x2x1
jax: 0.10.0
libtpu: 0.0.40
codegen_flags: <defaults>
</compile_context>

<pallas_src>
import jax
import jax.numpy as jnp
from jax.experimental import pallas as pl
from jax.experimental.pallas import tpu as pltpu

SUPPORT_LEN = 3
ORDER = 2


def gcn_kernel(x_ref, a_ref, w_ref, b_ref, o_ref):
    # x_ref: (B, V, CL) bf16   a_ref: (B, S*V, V) bf16
    # w_ref: (P*CL, OLp) bf16  b_ref: (1, OLp) f32   o_ref: (B, V, OLp) f32
    B, V, CL = x_ref.shape
    SV = a_ref.shape[1]
    S = SV // V
    OLp = o_ref.shape[2]
    P = w_ref.shape[0] // CL
    order = (P - 1) // S

    x = x_ref[...]                                        # (B, V, CL) bf16
    a = a_ref[...]                                        # (B, S*V, V) bf16

    # Fused 1x1-conv accumulator (f32): piece 0 is the identity (x) + bias.
    acc = jnp.dot(x.reshape(B * V, CL), w_ref[0:CL, :],
                  preferred_element_type=jnp.float32)     # (B*V, OLp)
    acc = acc + b_ref[...]

    # First hop of ALL supports fused into one matmul per batch element:
    # g1[b, (s,w), (c,l)] = sum_v a[b, (s,w), v] * x[b, v, (c,l)]
    g1 = jnp.einsum('bwv,bvd->bwd', a, x,
                    preferred_element_type=jnp.float32)   # (B, S*V, CL) f32

    for s in range(S):
        g = g1[:, s * V:(s + 1) * V, :]                   # (B, V, CL) f32
        a_s = a[:, s * V:(s + 1) * V, :]                  # (B, V, V)  bf16
        for k in range(order):
            if k > 0:                                     # higher-order hops
                g = jnp.einsum('bwv,bvd->bwd', a_s, g.astype(jnp.bfloat16),
                               preferred_element_type=jnp.float32)
            p = 1 + s * order + k                         # position in channel concat
            # Fused conv contribution of this piece: (B*V, CL) @ (CL, OLp).
            acc += jnp.dot(g.astype(jnp.bfloat16).reshape(B * V, CL),
                           w_ref[p * CL:(p + 1) * CL, :],
                           preferred_element_type=jnp.float32)

    # Lane-dense (OLp % 128 == 0) unmasked store.
    o_ref[...] = acc.reshape(B, V, OLp).astype(o_ref.dtype)
    # TODO(synk): F.dropout(training=True) is stochastic; implemented as identity
    # (inference-mode dropout).


def _pick_batch_block(N, V):
    """Largest divisor B of N with B*V <= 256 rows; when N allows, keep >= 4 grid
    steps so v7x's two TensorCores each get >= 2 steps."""
    candidates = [b for b in range(1, N + 1) if N % b == 0 and b * V <= 256]
    if not candidates:
        return 1
    with_steps = [b for b in candidates if N // b >= 4]
    return max(with_steps) if with_steps else max(candidates)


def gcn_forward(x_nchw, supports, weight, bias, *, batch_block=None,
                compute_dtype=jnp.bfloat16):
    """x_nchw: (N, C, V, L); supports: list of (N, V, V);
       weight: (c_out, P*C) squeezed Conv2d(1x1) weight; bias: (c_out,)."""
    N, C, V, L = x_nchw.shape
    S = len(supports)
    P = S * ORDER + 1
    c_out = weight.shape[0]
    assert weight.shape[1] == P * C

    CL = C * L
    OL = c_out * L
    OLp = ((OL + 127) // 128) * 128              # lane-dense output width

    B = batch_block or _pick_batch_block(N, V)
    assert N % B == 0

    # ---- wrapper-side layout plumbing (XLA ops, done once) ------------------
    # NOTE: if the downstream consumer can take (N, V, c_out, L) / the producer can
    # emit (N, V, C, L), both transposes below (and their HBM round-trips) go away.
    x_k = jnp.transpose(x_nchw, (0, 2, 1, 3)).reshape(N, V, CL).astype(compute_dtype)
    a_stack = jnp.stack(supports, axis=1).reshape(N, S * V, V).astype(compute_dtype)

    # Block-expand the 1x1-conv weight so "contract (p,c), keep l" is a flat matmul
    # on the (c,l)-flattened lane axis.  (Block-diagonal in l => Lx FLOP inflation;
    # acceptable at small L and kept in bf16, as recommended.)
    w3 = weight.reshape(c_out, P, C)
    eye = jnp.eye(L, dtype=weight.dtype)
    w_exp = jnp.einsum('opc,lm->pclom', w3, eye).reshape(P * CL, OL)
    w_exp = jnp.pad(w_exp, ((0, 0), (0, OLp - OL))).astype(compute_dtype)
    b_exp = jnp.pad(jnp.repeat(bias, L), (0, OLp - OL)).reshape(1, OLp)
    b_exp = b_exp.astype(jnp.float32)

    # ---- derived VMEM budget (capped for v7x's 64 MiB physical VMEM) --------
    isz = jnp.dtype(compute_dtype).itemsize
    need = (2 * B * V * CL * isz                 # x blocks (double-buffered)
            + 2 * B * S * V * V * isz            # A blocks
            + 2 * B * V * OLp * 4                # out blocks (f32)
            + 2 * P * CL * OLp * isz             # resident weight (worst case 2 bufs)
            + 2 * OLp * 4                        # resident bias
            + (B * S * V * CL + B * V * OLp) * 4)  # in-kernel f32 intermediates
    vmem_limit = int(min(max(2 * need + (4 << 20), 16 << 20), 48 << 20))

    def run(single_buffer_weights):
        resident_kw = (dict(pipeline_mode=pl.Buffered(1))
                       if single_buffer_weights else {})
        grid_spec = pltpu.PrefetchScalarGridSpec(
            num_scalar_prefetch=0,
            grid=(N // B,),
            in_specs=[
                pl.BlockSpec((B, V, CL), lambda i: (i, 0, 0)),
                # If profiling shows the A-block DMA exposed at production V on v6e,
                # raise this spec's buffering (pipeline_mode=pl.Buffered(3)).
                pl.BlockSpec((B, S * V, V), lambda i: (i, 0, 0)),
                pl.BlockSpec((P * CL, OLp), lambda i: (0, 0), **resident_kw),
                pl.BlockSpec((1, OLp), lambda i: (0, 0), **resident_kw),
            ],
            out_specs=pl.BlockSpec((B, V, OLp), lambda i: (i, 0, 0)),
        )
        return pl.pallas_call(
            gcn_kernel,
            out_shape=jax.ShapeDtypeStruct((N, V, OLp), x_nchw.dtype),
            grid_spec=grid_spec,
            compiler_params=pltpu.CompilerParams(
                dimension_semantics=("parallel",),
                vmem_limit_bytes=vmem_limit,
            ),
        )(x_k, a_stack, w_exp, b_exp)

    try:
        # Grid-invariant weight/bias: single-buffer them (saves VMEM, esp. v7x).
        out_k = jax.block_until_ready(run(True))
    except Exception:
        # Fallback for jax versions that reject pl.Buffered(1) on pallas_call specs.
        out_k = run(False)

    # (N, V, OLp) -> strip lane padding -> (N, c_out, V, L)
    out_k = out_k[:, :, :OL].reshape(N, V, c_out, L)
    return jnp.transpose(out_k, (0, 2, 1, 3))


def gcn_ref(x, supports, weight, bias):
    """Pure-JAX f32 reference matching the PyTorch forward (eval mode)."""
    hp = jax.lax.Precision.HIGHEST
    out = [x]
    for a in supports:
        x1 = jnp.einsum('ncvl,nwv->ncwl', x, a, precision=hp)
        out.append(x1)
        for _ in range(2, ORDER + 1):
            x2 = jnp.einsum('ncvl,nwv->ncwl', x1, a, precision=hp)
            out.append(x2)
            x1 = x2
    h = jnp.concatenate(out, axis=1)
    y = jnp.einsum('oi,nivl->novl', weight, h, precision=hp)
    return y + bias[None, :, None, None]


if __name__ == "__main__":
    key = jax.random.PRNGKey(0)
    N, C, V, L, c_out = 2, 4, 16, 8, 8
    P = SUPPORT_LEN * ORDER + 1

    ks = jax.random.split(key, 3 + SUPPORT_LEN)
    x = jax.random.normal(ks[0], (N, C, V, L), jnp.float32)
    supports = [
        jax.random.uniform(ks[3 + s], (N, V, V), jnp.float32)
        for s in range(SUPPORT_LEN)
    ]
    # row-normalize so values behave like adjacency weights (deterministic)
    supports = [a / jnp.sum(a, axis=-1, keepdims=True) for a in supports]

    # deterministic synthetic Conv2d(1x1) parameters
    weight = 0.1 * jax.random.normal(ks[1], (c_out, P * C), jnp.float32)
    bias = 0.1 * jax.random.normal(ks[2], (c_out,), jnp.float32)

    y = gcn_forward(x, supports, weight, bias)
    y = jax.block_until_ready(y)

    y_ref = gcn_ref(x, supports, weight, bias)
    # bf16 inputs with f32 accumulation -> loosened tolerance (per perf review).
    err = float(jnp.max(jnp.abs(y - y_ref)))
    assert jnp.allclose(y, y_ref, atol=3e-2, rtol=3e-2), f"max abs err {err}"

    print("KERNEL_OK")
</pallas_src>

<mosaic_0001>
module attributes {stable_mosaic.version = 11 : i64} {
  func.func @gcn_kernel(%arg0: i32, %arg1: memref<2x16x32xbf16, #tpu.memory_space<vmem>>, %arg2: memref<2x48x16xbf16, #tpu.memory_space<vmem>>, %arg3: memref<224x128xbf16, #tpu.memory_space<vmem>>, %arg4: memref<1x128xf32, #tpu.memory_space<vmem>>, %arg5: memref<2x16x128xf32, #tpu.memory_space<vmem>>) attributes {dimension_semantics = [#tpu.dimension_semantics<parallel>], iteration_bounds = array<i64: 1>, scalar_prefetch = 0 : i64, scratch_operands = 0 : i64, tpu.core_type = #tpu.core_type<tc>, window_params = [{transform_indices = @transform_0, window_bounds = array<i64: 2, 16, 32>}, {transform_indices = @transform_1, window_bounds = array<i64: 2, 48, 16>}, {pipeline_mode = #tpu.pipeline_mode<synchronous>, transform_indices = @transform_2, window_bounds = array<i64: 224, 128>}, {pipeline_mode = #tpu.pipeline_mode<synchronous>, transform_indices = @transform_3, window_bounds = array<i64: 1, 128>}, {transform_indices = @transform_4, window_bounds = array<i64: 2, 16, 128>}]} {
    %c0 = arith.constant 0 : index
    %c0_0 = arith.constant 0 : index
    %c0_1 = arith.constant 0 : index
    %0 = vector.load %arg1[%c0, %c0_0, %c0_1] : memref<2x16x32xbf16, #tpu.memory_space<vmem>>, vector<2x16x32xbf16>
    %c0_2 = arith.constant 0 : index
    %c0_3 = arith.constant 0 : index
    %c0_4 = arith.constant 0 : index
    %1 = vector.load %arg2[%c0_2, %c0_3, %c0_4] : memref<2x48x16xbf16, #tpu.memory_space<vmem>>, vector<2x48x16xbf16>
    %2 = vector.shape_cast %0 : vector<2x16x32xbf16> to vector<32x32xbf16>
    %c0_5 = arith.constant 0 : index
    %c0_6 = arith.constant 0 : index
    %3 = vector.load %arg3[%c0_5, %c0_6] : memref<224x128xbf16, #tpu.memory_space<vmem>>, vector<32x128xbf16>
    %cst = arith.constant dense<0.000000e+00> : vector<32x128xf32>
    %4 = tpu.matmul %2, %3, %cst {dimension_numbers = #tpu.dot_dimension_numbers<[1], [0], [0], [1], [0, 0, 1, 1], [], []>} : vector<32x32xbf16>, vector<32x128xbf16>, vector<32x128xf32> -> vector<32x128xf32>
    %c0_7 = arith.constant 0 : index
    %c0_8 = arith.constant 0 : index
    %5 = vector.load %arg4[%c0_7, %c0_8] : memref<1x128xf32, #tpu.memory_space<vmem>>, vector<1x128xf32>
    %6 = vector.broadcast %5 : vector<1x128xf32> to vector<32x128xf32>
    %7 = arith.addf %4, %6 : vector<32x128xf32>
    "tpu.trace_start"() <{level = 10 : i32, message = "bwv,bvd->bwd"}> : () -> ()
    %cst_9 = arith.constant dense<0.000000e+00> : vector<2x48x32xf32>
    %8 = tpu.matmul %1, %0, %cst_9 {dimension_numbers = #tpu.dot_dimension_numbers<[2], [1], [1], [2], [0, 0, 0, 1, 1, 2], [0], [0]>} : vector<2x48x16xbf16>, vector<2x16x32xbf16>, vector<2x48x32xf32> -> vector<2x48x32xf32>
    "tpu.trace_stop"() : () -> ()
    %9 = vector.extract_strided_slice %8 {offsets = [0, 0, 0], sizes = [2, 16, 32], strides = [1, 1, 1]} : vector<2x48x32xf32> to vector<2x16x32xf32>
    %10 = vector.extract_strided_slice %1 {offsets = [0, 0, 0], sizes = [2, 16, 16], strides = [1, 1, 1]} : vector<2x48x16xbf16> to vector<2x16x16xbf16>
    %11 = arith.truncf %9 : vector<2x16x32xf32> to vector<2x16x32xbf16>
    %12 = vector.shape_cast %11 : vector<2x16x32xbf16> to vector<32x32xbf16>
    %c32 = arith.constant 32 : index
    %c0_10 = arith.constant 0 : index
    %13 = vector.load %arg3[%c32, %c0_10] : memref<224x128xbf16, #tpu.memory_space<vmem>>, vector<32x128xbf16>
    %cst_11 = arith.constant dense<0.000000e+00> : vector<32x128xf32>
    %14 = tpu.matmul %12, %13, %cst_11 {dimension_numbers = #tpu.dot_dimension_numbers<[1], [0], [0], [1], [0, 0, 1, 1], [], []>} : vector<32x32xbf16>, vector<32x128xbf16>, vector<32x128xf32> -> vector<32x128xf32>
    %15 = arith.addf %7, %14 : vector<32x128xf32>
    %16 = arith.truncf %9 : vector<2x16x32xf32> to vector<2x16x32xbf16>
    "tpu.trace_start"() <{level = 10 : i32, message = "bwv,bvd->bwd"}> : () -> ()
    %cst_12 = arith.constant dense<0.000000e+00> : vector<2x16x32xf32>
    %17 = tpu.matmul %10, %16, %cst_12 {dimension_numbers = #tpu.dot_dimension_numbers<[2], [1], [1], [2], [0, 0, 0, 1, 1, 2], [0], [0]>} : vector<2x16x16xbf16>, vector<2x16x32xbf16>, vector<2x16x32xf32> -> vector<2x16x32xf32>
    "tpu.trace_stop"() : () -> ()
    %18 = arith.truncf %17 : vector<2x16x32xf32> to vector<2x16x32xbf16>
    %19 = vector.shape_cast %18 : vector<2x16x32xbf16> to vector<32x32xbf16>
    %c64 = arith.constant 64 : index
    %c0_13 = arith.constant 0 : index
    %20 = vector.load %arg3[%c64, %c0_13] : memref<224x128xbf16, #tpu.memory_space<vmem>>, vector<32x128xbf16>
    %cst_14 = arith.constant dense<0.000000e+00> : vector<32x128xf32>
    %21 = tpu.matmul %19, %20, %cst_14 {dimension_numbers = #tpu.dot_dimension_numbers<[1], [0], [0], [1], [0, 0, 1, 1], [], []>} : vector<32x32xbf16>, vector<32x128xbf16>, vector<32x128xf32> -> vector<32x128xf32>
    %22 = arith.addf %15, %21 : vector<32x128xf32>
    %23 = vector.extract_strided_slice %8 {offsets = [0, 16, 0], sizes = [2, 16, 32], strides = [1, 1, 1]} : vector<2x48x32xf32> to vector<2x16x32xf32>
    %24 = vector.extract_strided_slice %1 {offsets = [0, 16, 0], sizes = [2, 16, 16], strides = [1, 1, 1]} : vector<2x48x16xbf16> to vector<2x16x16xbf16>
    %25 = arith.truncf %23 : vector<2x16x32xf32> to vector<2x16x32xbf16>
    %26 = vector.shape_cast %25 : vector<2x16x32xbf16> to vector<32x32xbf16>
    %c96 = arith.constant 96 : index
    %c0_15 = arith.constant 0 : index
    %27 = vector.load %arg3[%c96, %c0_15] : memref<224x128xbf16, #tpu.memory_space<vmem>>, vector<32x128xbf16>
    %cst_16 = arith.constant dense<0.000000e+00> : vector<32x128xf32>
    %28 = tpu.matmul %26, %27, %cst_16 {dimension_numbers = #tpu.dot_dimension_numbers<[1], [0], [0], [1], [0, 0, 1, 1], [], []>} : vector<32x32xbf16>, vector<32x128xbf16>, vector<32x128xf32> -> vector<32x128xf32>
    %29 = arith.addf %22, %28 : vector<32x128xf32>
    %30 = arith.truncf %23 : vector<2x16x32xf32> to vector<2x16x32xbf16>
    "tpu.trace_start"() <{level = 10 : i32, message = "bwv,bvd->bwd"}> : () -> ()
    %cst_17 = arith.constant dense<0.000000e+00> : vector<2x16x32xf32>
    %31 = tpu.matmul %24, %30, %cst_17 {dimension_numbers = #tpu.dot_dimension_numbers<[2], [1], [1], [2], [0, 0, 0, 1, 1, 2], [0], [0]>} : vector<2x16x16xbf16>, vector<2x16x32xbf16>, vector<2x16x32xf32> -> vector<2x16x32xf32>
    "tpu.trace_stop"() : () -> ()
    %32 = arith.truncf %31 : vector<2x16x32xf32> to vector<2x16x32xbf16>
    %33 = vector.shape_cast %32 : vector<2x16x32xbf16> to vector<32x32xbf16>
    %c128 = arith.constant 128 : index
    %c0_18 = arith.constant 0 : index
    %34 = vector.load %arg3[%c128, %c0_18] : memref<224x128xbf16, #tpu.memory_space<vmem>>, vector<32x128xbf16>
    %cst_19 = arith.constant dense<0.000000e+00> : vector<32x128xf32>
    %35 = tpu.matmul %33, %34, %cst_19 {dimension_numbers = #tpu.dot_dimension_numbers<[1], [0], [0], [1], [0, 0, 1, 1], [], []>} : vector<32x32xbf16>, vector<32x128xbf16>, vector<32x128xf32> -> vector<32x128xf32>
    %36 = arith.addf %29, %35 : vector<32x128xf32>
    %37 = vector.extract_strided_slice %8 {offsets = [0, 32, 0], sizes = [2, 16, 32], strides = [1, 1, 1]} : vector<2x48x32xf32> to vector<2x16x32xf32>
    %38 = vector.extract_strided_slice %1 {offsets = [0, 32, 0], sizes = [2, 16, 16], strides = [1, 1, 1]} : vector<2x48x16xbf16> to vector<2x16x16xbf16>
    %39 = arith.truncf %37 : vector<2x16x32xf32> to vector<2x16x32xbf16>
    %40 = vector.shape_cast %39 : vector<2x16x32xbf16> to vector<32x32xbf16>
    %c160 = arith.constant 160 : index
    %c0_20 = arith.constant 0 : index
    %41 = vector.load %arg3[%c160, %c0_20] : memref<224x128xbf16, #tpu.memory_space<vmem>>, vector<32x128xbf16>
    %cst_21 = arith.constant dense<0.000000e+00> : vector<32x128xf32>
    %42 = tpu.matmul %40, %41, %cst_21 {dimension_numbers = #tpu.dot_dimension_numbers<[1], [0], [0], [1], [0, 0, 1, 1], [], []>} : vector<32x32xbf16>, vector<32x128xbf16>, vector<32x128xf32> -> vector<32x128xf32>
    %43 = arith.addf %36, %42 : vector<32x128xf32>
    %44 = arith.truncf %37 : vector<2x16x32xf32> to vector<2x16x32xbf16>
    "tpu.trace_start"() <{level = 10 : i32, message = "bwv,bvd->bwd"}> : () -> ()
    %cst_22 = arith.constant dense<0.000000e+00> : vector<2x16x32xf32>
    %45 = tpu.matmul %38, %44, %cst_22 {dimension_numbers = #tpu.dot_dimension_numbers<[2], [1], [1], [2], [0, 0, 0, 1, 1, 2], [0], [0]>} : vector<2x16x16xbf16>, vector<2x16x32xbf16>, vector<2x16x32xf32> -> vector<2x16x32xf32>
    "tpu.trace_stop"() : () -> ()
    %46 = arith.truncf %45 : vector<2x16x32xf32> to vector<2x16x32xbf16>
    %47 = vector.shape_cast %46 : vector<2x16x32xbf16> to vector<32x32xbf16>
    %c192 = arith.constant 192 : index
    %c0_23 = arith.constant 0 : index
    %48 = vector.load %arg3[%c192, %c0_23] : memref<224x128xbf16, #tpu.memory_space<vmem>>, vector<32x128xbf16>
    %cst_24 = arith.constant dense<0.000000e+00> : vector<32x128xf32>
    %49 = tpu.matmul %47, %48, %cst_24 {dimension_numbers = #tpu.dot_dimension_numbers<[1], [0], [0], [1], [0, 0, 1, 1], [], []>} : vector<32x32xbf16>, vector<32x128xbf16>, vector<32x128xf32> -> vector<32x128xf32>
    %50 = arith.addf %43, %49 : vector<32x128xf32>
    %51 = vector.shape_cast %50 : vector<32x128xf32> to vector<2x16x128xf32>
    %c0_25 = arith.constant 0 : index
    %c0_26 = arith.constant 0 : index
    %c0_27 = arith.constant 0 : index
    %52 = vector.load %arg5[%c0_25, %c0_26, %c0_27] : memref<2x16x128xf32, #tpu.memory_space<vmem>>, vector<2x16x128xf32>
    tpu.vector_store %arg5[%c0_25, %c0_26, %c0_27], %51 {strides = array<i32>} : memref<2x16x128xf32, #tpu.memory_space<vmem>>, vector<2x16x128xf32>,
    return
  }
  func.func @transform_0(%arg0: i32) -> (i32, i32, i32) {
    %c0_i32 = arith.constant 0 : i32
    %c0_i32_0 = arith.constant 0 : i32
    %c0_i32_1 = arith.constant 0 : i32
    return %arg0, %c0_i32, %c0_i32_0 : i32, i32, i32
  }
  func.func @transform_1(%arg0: i32) -> (i32, i32, i32) {
    %c0_i32 = arith.constant 0 : i32
    %c0_i32_0 = arith.constant 0 : i32
    %c0_i32_1 = arith.constant 0 : i32
    return %arg0, %c0_i32, %c0_i32_0 : i32, i32, i32
  }
  func.func @transform_2(%arg0: i32) -> (i32, i32) {
    %c0_i32 = arith.constant 0 : i32
    %c0_i32_0 = arith.constant 0 : i32
    %c0_i32_1 = arith.constant 0 : i32
    return %c0_i32, %c0_i32_0 : i32, i32
  }
  func.func @transform_3(%arg0: i32) -> (i32, i32) {
    %c0_i32 = arith.constant 0 : i32
    %c0_i32_0 = arith.constant 0 : i32
    %c0_i32_1 = arith.constant 0 : i32
    return %c0_i32, %c0_i32_0 : i32, i32
  }
  func.func @transform_4(%arg0: i32) -> (i32, i32, i32) {
    %c0_i32 = arith.constant 0 : i32
    %c0_i32_0 = arith.constant 0 : i32
    %c0_i32_1 = arith.constant 0 : i32
    return %arg0, %c0_i32, %c0_i32_0 : i32, i32, i32
  }
}

module attributes {stable_mosaic.version = 11 : i64} {
  func.func @gcn_kernel(%arg0: i32, %arg1: memref<2x16x32xbf16, #tpu.memory_space<vmem>>, %arg2: memref<2x48x16xbf16, #tpu.memory_space<vmem>>, %arg3: memref<224x128xbf16, #tpu.memory_space<vmem>>, %arg4: memref<1x128xf32, #tpu.memory_space<vmem>>, %arg5: memref<2x16x128xf32, #tpu.memory_space<vmem>>) attributes {dimension_semantics = [#tpu.dimension_semantics<parallel>], iteration_bounds = array<i64: 1>, scalar_prefetch = 0 : i64, scratch_operands = 0 : i64, tpu.core_type = #tpu.core_type<tc>, window_params = [{transform_indices = @transform_0, window_bounds = array<i64: 2, 16, 32>}, {transform_indices = @transform_1, window_bounds = array<i64: 2, 48, 16>}, {pipeline_mode = #tpu.pipeline_mode<synchronous>, transform_indices = @transform_2, window_bounds = array<i64: 224, 128>}, {pipeline_mode = #tpu.pipeline_mode<synchronous>, transform_indices = @transform_3, window_bounds = array<i64: 1, 128>}, {transform_indices = @transform_4, window_bounds = array<i64: 2, 16, 128>}]} {
    %c0 = arith.constant 0 : index
    %c0_0 = arith.constant 0 : index
    %c0_1 = arith.constant 0 : index
    %0 = vector.load %arg1[%c0, %c0_0, %c0_1] : memref<2x16x32xbf16, #tpu.memory_space<vmem>>, vector<2x16x32xbf16>
    %c0_2 = arith.constant 0 : index
    %c0_3 = arith.constant 0 : index
    %c0_4 = arith.constant 0 : index
    %1 = vector.load %arg2[%c0_2, %c0_3, %c0_4] : memref<2x48x16xbf16, #tpu.memory_space<vmem>>, vector<2x48x16xbf16>
    %2 = vector.shape_cast %0 : vector<2x16x32xbf16> to vector<32x32xbf16>
    %c0_5 = arith.constant 0 : index
    %c0_6 = arith.constant 0 : index
    %3 = vector.load %arg3[%c0_5, %c0_6] : memref<224x128xbf16, #tpu.memory_space<vmem>>, vector<32x128xbf16>
    %cst = arith.constant dense<0.000000e+00> : vector<32x128xf32>
    %4 = tpu.matmul %2, %3, %cst {dimension_numbers = #tpu.dot_dimension_numbers<[1], [0], [0], [1], [0, 0, 1, 1], [], []>} : vector<32x32xbf16>, vector<32x128xbf16>, vector<32x128xf32> -> vector<32x128xf32>
    %c0_7 = arith.constant 0 : index
    %c0_8 = arith.constant 0 : index
    %5 = vector.load %arg4[%c0_7, %c0_8] : memref<1x128xf32, #tpu.memory_space<vmem>>, vector<1x128xf32>
    %6 = vector.broadcast %5 : vector<1x128xf32> to vector<32x128xf32>
    %7 = arith.addf %4, %6 : vector<32x128xf32>
    "tpu.trace_start"() <{level = 10 : i32, message = "bwv,bvd->bwd"}> : () -> ()
    %cst_9 = arith.constant dense<0.000000e+00> : vector<2x48x32xf32>
    %8 = tpu.matmul %1, %0, %cst_9 {dimension_numbers = #tpu.dot_dimension_numbers<[2], [1], [1], [2], [0, 0, 0, 1, 1, 2], [0], [0]>} : vector<2x48x16xbf16>, vector<2x16x32xbf16>, vector<2x48x32xf32> -> vector<2x48x32xf32>
    "tpu.trace_stop"() : () -> ()
    %9 = vector.extract_strided_slice %8 {offsets = [0, 0, 0], sizes = [2, 16, 32], strides = [1, 1, 1]} : vector<2x48x32xf32> to vector<2x16x32xf32>
    %10 = vector.extract_strided_slice %1 {offsets = [0, 0, 0], sizes = [2, 16, 16], strides = [1, 1, 1]} : vector<2x48x16xbf16> to vector<2x16x16xbf16>
    %11 = arith.truncf %9 : vector<2x16x32xf32> to vector<2x16x32xbf16>
    %12 = vector.shape_cast %11 : vector<2x16x32xbf16> to vector<32x32xbf16>
    %c32 = arith.constant 32 : index
    %c0_10 = arith.constant 0 : index
    %13 = vector.load %arg3[%c32, %c0_10] : memref<224x128xbf16, #tpu.memory_space<vmem>>, vector<32x128xbf16>
    %cst_11 = arith.constant dense<0.000000e+00> : vector<32x128xf32>
    %14 = tpu.matmul %12, %13, %cst_11 {dimension_numbers = #tpu.dot_dimension_numbers<[1], [0], [0], [1], [0, 0, 1, 1], [], []>} : vector<32x32xbf16>, vector<32x128xbf16>, vector<32x128xf32> -> vector<32x128xf32>
    %15 = arith.addf %7, %14 : vector<32x128xf32>
    %16 = arith.truncf %9 : vector<2x16x32xf32> to vector<2x16x32xbf16>
    "tpu.trace_start"() <{level = 10 : i32, message = "bwv,bvd->bwd"}> : () -> ()
    %cst_12 = arith.constant dense<0.000000e+00> : vector<2x16x32xf32>
    %17 = tpu.matmul %10, %16, %cst_12 {dimension_numbers = #tpu.dot_dimension_numbers<[2], [1], [1], [2], [0, 0, 0, 1, 1, 2], [0], [0]>} : vector<2x16x16xbf16>, vector<2x16x32xbf16>, vector<2x16x32xf32> -> vector<2x16x32xf32>
    "tpu.trace_stop"() : () -> ()
    %18 = arith.truncf %17 : vector<2x16x32xf32> to vector<2x16x32xbf16>
    %19 = vector.shape_cast %18 : vector<2x16x32xbf16> to vector<32x32xbf16>
    %c64 = arith.constant 64 : index
    %c0_13 = arith.constant 0 : index
    %20 = vector.load %arg3[%c64, %c0_13] : memref<224x128xbf16, #tpu.memory_space<vmem>>, vector<32x128xbf16>
    %cst_14 = arith.constant dense<0.000000e+00> : vector<32x128xf32>
    %21 = tpu.matmul %19, %20, %cst_14 {dimension_numbers = #tpu.dot_dimension_numbers<[1], [0], [0], [1], [0, 0, 1, 1], [], []>} : vector<32x32xbf16>, vector<32x128xbf16>, vector<32x128xf32> -> vector<32x128xf32>
    %22 = arith.addf %15, %21 : vector<32x128xf32>
    %23 = vector.extract_strided_slice %8 {offsets = [0, 16, 0], sizes = [2, 16, 32], strides = [1, 1, 1]} : vector<2x48x32xf32> to vector<2x16x32xf32>
    %24 = vector.extract_strided_slice %1 {offsets = [0, 16, 0], sizes = [2, 16, 16], strides = [1, 1, 1]} : vector<2x48x16xbf16> to vector<2x16x16xbf16>
    %25 = arith.truncf %23 : vector<2x16x32xf32> to vector<2x16x32xbf16>
    %26 = vector.shape_cast %25 : vector<2x16x32xbf16> to vector<32x32xbf16>
    %c96 = arith.constant 96 : index
    %c0_15 = arith.constant 0 : index
    %27 = vector.load %arg3[%c96, %c0_15] : memref<224x128xbf16, #tpu.memory_space<vmem>>, vector<32x128xbf16>
    %cst_16 = arith.constant dense<0.000000e+00> : vector<32x128xf32>
    %28 = tpu.matmul %26, %27, %cst_16 {dimension_numbers = #tpu.dot_dimension_numbers<[1], [0], [0], [1], [0, 0, 1, 1], [], []>} : vector<32x32xbf16>, vector<32x128xbf16>, vector<32x128xf32> -> vector<32x128xf32>
    %29 = arith.addf %22, %28 : vector<32x128xf32>
    %30 = arith.truncf %23 : vector<2x16x32xf32> to vector<2x16x32xbf16>
    "tpu.trace_start"() <{level = 10 : i32, message = "bwv,bvd->bwd"}> : () -> ()
    %cst_17 = arith.constant dense<0.000000e+00> : vector<2x16x32xf32>
    %31 = tpu.matmul %24, %30, %cst_17 {dimension_numbers = #tpu.dot_dimension_numbers<[2], [1], [1], [2], [0, 0, 0, 1, 1, 2], [0], [0]>} : vector<2x16x16xbf16>, vector<2x16x32xbf16>, vector<2x16x32xf32> -> vector<2x16x32xf32>
    "tpu.trace_stop"() : () -> ()
    %32 = arith.truncf %31 : vector<2x16x32xf32> to vector<2x16x32xbf16>
    %33 = vector.shape_cast %32 : vector<2x16x32xbf16> to vector<32x32xbf16>
    %c128 = arith.constant 128 : index
    %c0_18 = arith.constant 0 : index
    %34 = vector.load %arg3[%c128, %c0_18] : memref<224x128xbf16, #tpu.memory_space<vmem>>, vector<32x128xbf16>
    %cst_19 = arith.constant dense<0.000000e+00> : vector<32x128xf32>
    %35 = tpu.matmul %33, %34, %cst_19 {dimension_numbers = #tpu.dot_dimension_numbers<[1], [0], [0], [1], [0, 0, 1, 1], [], []>} : vector<32x32xbf16>, vector<32x128xbf16>, vector<32x128xf32> -> vector<32x128xf32>
    %36 = arith.addf %29, %35 : vector<32x128xf32>
    %37 = vector.extract_strided_slice %8 {offsets = [0, 32, 0], sizes = [2, 16, 32], strides = [1, 1, 1]} : vector<2x48x32xf32> to vector<2x16x32xf32>
    %38 = vector.extract_strided_slice %1 {offsets = [0, 32, 0], sizes = [2, 16, 16], strides = [1, 1, 1]} : vector<2x48x16xbf16> to vector<2x16x16xbf16>
    %39 = arith.truncf %37 : vector<2x16x32xf32> to vector<2x16x32xbf16>
    %40 = vector.shape_cast %39 : vector<2x16x32xbf16> to vector<32x32xbf16>
    %c160 = arith.constant 160 : index
    %c0_20 = arith.constant 0 : index
    %41 = vector.load %arg3[%c160, %c0_20] : memref<224x128xbf16, #tpu.memory_space<vmem>>, vector<32x128xbf16>
    %cst_21 = arith.constant dense<0.000000e+00> : vector<32x128xf32>
    %42 = tpu.matmul %40, %41, %cst_21 {dimension_numbers = #tpu.dot_dimension_numbers<[1], [0], [0], [1], [0, 0, 1, 1], [], []>} : vector<32x32xbf16>, vector<32x128xbf16>, vector<32x128xf32> -> vector<32x128xf32>
    %43 = arith.addf %36, %42 : vector<32x128xf32>
    %44 = arith.truncf %37 : vector<2x16x32xf32> to vector<2x16x32xbf16>
    "tpu.trace_start"() <{level = 10 : i32, message = "bwv,bvd->bwd"}> : () -> ()
    %cst_22 = arith.constant dense<0.000000e+00> : vector<2x16x32xf32>
    %45 = tpu.matmul %38, %44, %cst_22 {dimension_numbers = #tpu.dot_dimension_numbers<[2], [1], [1], [2], [0, 0, 0, 1, 1, 2], [0], [0]>} : vector<2x16x16xbf16>, vector<2x16x32xbf16>, vector<2x16x32xf32> -> vector<2x16x32xf32>
    "tpu.trace_stop"() : () -> ()
    %46 = arith.truncf %45 : vector<2x16x32xf32> to vector<2x16x32xbf16>
    %47 = vector.shape_cast %46 : vector<2x16x32xbf16> to vector<32x32xbf16>
    %c192 = arith.constant 192 : index
    %c0_23 = arith.constant 0 : index
    %48 = vector.load %arg3[%c192, %c0_23] : memref<224x128xbf16, #tpu.memory_space<vmem>>, vector<32x128xbf16>
    %cst_24 = arith.constant dense<0.000000e+00> : vector<32x128xf32>
    %49 = tpu.matmul %47, %48, %cst_24 {dimension_numbers = #tpu.dot_dimension_numbers<[1], [0], [0], [1], [0, 0, 1, 1], [], []>} : vector<32x32xbf16>, vector<32x128xbf16>, vector<32x128xf32> -> vector<32x128xf32>
    %50 = arith.addf %43, %49 : vector<32x128xf32>
    %51 = vector.shape_cast %50 : vector<32x128xf32> to vector<2x16x128xf32>
    %c0_25 = arith.constant 0 : index
    %c0_26 = arith.constant 0 : index
    %c0_27 = arith.constant 0 : index
    %52 = vector.load %arg5[%c0_25, %c0_26, %c0_27] : memref<2x16x128xf32, #tpu.memory_space<vmem>>, vector<2x16x128xf32>
    tpu.vector_store %arg5[%c0_25, %c0_26, %c0_27], %51 {strides = array<i32>} : memref<2x16x128xf32, #tpu.memory_space<vmem>>, vector<2x16x128xf32>,
    return
  }
  func.func @transform_0(%arg0: i32) -> (i32, i32, i32) {
    %c0_i32 = arith.constant 0 : i32
    %c0_i32_0 = arith.constant 0 : i32
    %c0_i32_1 = arith.constant 0 : i32
    return %arg0, %c0_i32, %c0_i32_0 : i32, i32, i32
  }
  func.func @transform_1(%arg0: i32) -> (i32, i32, i32) {
    %c0_i32 = arith.constant 0 : i32
    %c0_i32_0 = arith.constant 0 : i32
    %c0_i32_1 = arith.constant 0 : i32
    return %arg0, %c0_i32, %c0_i32_0 : i32, i32, i32
  }
  func.func @transform_2(%arg0: i32) -> (i32, i32) {
    %c0_i32 = arith.constant 0 : i32
    %c0_i32_0 = arith.constant 0 : i32
    %c0_i32_1 = arith.constant 0 : i32
    return %c0_i32, %c0_i32_0 : i32, i32
  }
  func.func @transform_3(%arg0: i32) -> (i32, i32) {
    %c0_i32 = arith.constant 0 : i32
    %c0_i32_0 = arith.constant 0 : i32
    %c0_i32_1 = arith.constant 0 : i32
    return %c0_i32, %c0_i32_0 : i32, i32
  }
  func.func @transform_4(%arg0: i32) -> (i32, i32, i32) {
    %c0_i32 = arith.constant 0 : i32
    %c0_i32_0 = arith.constant 0 : i32
    %c0_i32_1 = arith.constant 0 : i32
    return %arg0, %c0_i32, %c0_i32_0 : i32, i32, i32
  }
}

</mosaic_0001>

<llo_original>
// kernel: tpu_custom_call.1
$region0: #{tpu_custom_call.1}
  #allocation0 [shape = 'u32[]', space=smem, size = 0x4, offset = 0x4, fixed_abs, tag = 'smem constant byte address 0x4 - core index']
  #allocation1 [shape = 'u32[144,128]{1,0:T(1,128)}', space=vmem, size = 0x12000, scoped, tag = 'internal scratch']
  %s0 = inlined_call_operand.vmem [shape: bf16[2,16,32], index: 0, kind: input, shape index: {}]
  %s1 = inlined_call_operand.vmem [shape: bf16[2,48,16], index: 1, kind: input, shape index: {}]
  %s2 = inlined_call_operand.hbm [shape: bf16[224,128], index: 2, kind: input, shape index: {}]
  %s3 = inlined_call_operand.vmem [shape: f32[1,128], index: 3, kind: input, shape index: {}]
  %s4 = inlined_call_operand.hbm [shape: f32[2,16,128], index: 4, kind: output, shape index: {}]
  %s5 = sld [smem:[#allocation0]]
  $region30: #{tpu_custom_call.1} parent=0
    _
  %s7 = ssub.s32 1, %s5
  %s8 = scalar_select 0, %s7, %s5
  $region1: #{tpu_custom_call.1} parent=0
    #allocation2 [shape = 'u8[57344]{0}', space=vmem, size = 0xe000, scoped, tag = 'input window, operand 2, single buffered']
    #allocation3 [shape = 's32[1]{0}', space=sflag, size = 0x4, scoped, tag = 'scoped memory for tpu_custom_call.1']
    #allocation4 [shape = 's32[1]{0}', space=sflag, size = 0x4, scoped, tag = 'scoped memory for tpu_custom_call.1']
    #allocation5 [shape = 'u8[16384]{0}', space=vmem, size = 0x4000, scoped, tag = 'output window, operand 0, single buffered']
    %9 = vsyncpa [#allocation3], 0
    %10 = vsyncpa [#allocation4], 0
    // Predicated region
    $region2: #{tpu_custom_call.1} parent=1 // pred_check
      _
    $region3: #{tpu_custom_call.1} parent=1 // pred_check_branch
      %12 = sbr.rel (0) target = $region5
    $region4: #{tpu_custom_call.1} parent=1 // pred_region
      _
    $region5: #{tpu_custom_call.1} parent=1 // pred_fallthru
      _
    // Predicated region
    $region6: #{tpu_custom_call.1} parent=1 // pred_check
      _
    $region7: #{tpu_custom_call.1} parent=1 // pred_check_branch
      %14 = sbr.rel (0) target = $region9
    $region8: #{tpu_custom_call.1} parent=1 // pred_region
      _
    $region9: #{tpu_custom_call.1} parent=1 // pred_fallthru
      _
    // Predicated region
    $region10: #{tpu_custom_call.1} parent=1 // pred_check
      _
    $region11: #{tpu_custom_call.1} parent=1 // pred_check_branch
      %16 = sbr.rel (0) target = $region13
    $region12: #{tpu_custom_call.1} parent=1 // pred_region
      %s18 = ssub.s32 1792, 1792
      %19 = vsyncadd [#allocation3], %s18
      %s20 = sshll.u32 [#allocation2], 4
      %s21 = int_to_ptr.vmem [resolvable:$true] %s20
      %26 = dma.hbm_to_vmem [thread:$0]  %s2, 1792, %s21, [#allocation3], 64, 64, 4
    $region13: #{tpu_custom_call.1} parent=1 // pred_fallthru
      _
    // Predicated region
    $region14: #{tpu_custom_call.1} parent=1 // pred_check
      _
    $region15: #{tpu_custom_call.1} parent=1 // pred_check_branch
      %28 = sbr.rel (0) target = $region17
    $region16: #{tpu_custom_call.1} parent=1 // pred_region
      _
    $region17: #{tpu_custom_call.1} parent=1 // pred_fallthru
      _
    // Predicated region
    $region18: #{tpu_custom_call.1} parent=1 // pred_check
      _
    $region19: #{tpu_custom_call.1} parent=1 // pred_check_branch
      %30 = sbr.rel (0) target = $region21
    $region20: #{tpu_custom_call.1} parent=1 // pred_region
      %31 = dma.done [#allocation3], 1792
    $region21: #{tpu_custom_call.1} parent=1 // pred_fallthru
      _
    %v33 = vld [vmem:[%s0] sm:$0xf]
    %v34 = vld [vmem:[%s0 + $0x4] sm:$0xf]
    %v35 = vld [vmem:[%s0 + $0x8] sm:$0xf]
    %v36 = vld [vmem:[%s0 + $0xc] sm:$0xf]
    %v37 = vld [vmem:[%s1] sm:$0xf]
    %v38 = vld [vmem:[%s1 + $0x4] sm:$0xf]
    %v39 = vld [vmem:[%s1 + $0x8] sm:$0xf]
    %v40 = vld [vmem:[%s1 + $0xc] sm:$0xf]
    %v41 = vld [vmem:[%s1 + $0x10] sm:$0xf]
    %v42 = vld [vmem:[%s1 + $0x14] sm:$0xf]
    %v43 = vld [vmem:[%s1 + $0x18] sm:$0xf]
    %v44 = vld [vmem:[%s1 + $0x1c] sm:$0xf]
    %v45 = vld [vmem:[%s1 + $0x20] sm:$0xf]
    %v46 = vld [vmem:[%s1 + $0x24] sm:$0xf]
    %v47 = vld [vmem:[%s1 + $0x28] sm:$0xf]
    %v48 = vld [vmem:[%s1 + $0x2c] sm:$0xf]
    %v49 = vld [vmem:[#allocation2] sm:$0xf]
    %v50 = vld [vmem:[#allocation2 + $0x4] sm:$0xf]
    %v51 = vld [vmem:[#allocation2 + $0x8] sm:$0xf]
    %v52 = vld [vmem:[#allocation2 + $0xc] sm:$0xf]
    %v53 = vld [vmem:[%s3] sm:$0x1]
    %v55 = vlaneseq
    %v56 = vshrl.u32 %v55, 7
    %v57 = vsub.s32 0, %v56
    %v58 = vrot.slane %v53, %v57
    %v64 = vunpack.c.l.b16 %v33
    %v65 = vunpack.c.l.b16 %v34
    %v66 = vunpack.c.l.b16 %v35
    %v67 = vunpack.c.l.b16 %v36
    %v68 = vpack.c.b16 %v65, %v64
    %v69 = vpack.c.b16 %v67, %v66
    %v74 = vunpack.c.l.b16 %v49
    %v75 = vunpack.c.l.b16 %v50
    %v76 = vunpack.c.l.b16 %v51
    %v77 = vunpack.c.l.b16 %v52
    %v78 = vpack.c.b16 %v75, %v74
    %v79 = vpack.c.b16 %v77, %v76
    %vm82 = vcmask 261120
    %v84 = vsel %vm82, %v68, 0
    %v87 = vsel %vm82, %v69, 0
    %89 = vmatprep.subr.bf16.mxu0 0
    %90 = vmatpush1.bf16.msra.mxu0 %v78
    %91 = vmatprep.subr.bf16.mxu0 0
    %92 = vmatpush1.bf16.msra.mxu0 %v79
    %93 = vmatprep.subr.bf16.mxu0 0
    %94 = vmatpush1.bf16.msra.mxu0 0
    %95 = vmatprep.subr.bf16.mxu0 0
    %96 = vmatpush1.bf16.msra.mxu0 0
    %97 = vmatprep.subr.bf16.mxu0 0
    %98 = vmatpush1.bf16.msra.mxu0 0
    %99 = vmatprep.subr.bf16.mxu0 0
    %100 = vmatpush1.bf16.msra.mxu0 0
    %101 = vmatprep.subr.bf16.mxu0 0
    %102 = vmatpush1.bf16.msra.mxu0 0
    %103 = vmatprep.subr.bf16.mxu0 0
    %104 = vmatpush1.bf16.msra.mxu0 0
    %105 = vmatprep.subr.bf16.mxu0 0
    %106 = vmatpush1.bf16.msra.mxu0 0
    %107 = vmatprep.subr.bf16.mxu0 0
    %108 = vmatpush1.bf16.msra.mxu0 0
    %109 = vmatprep.subr.bf16.mxu0 0
    %110 = vmatpush1.bf16.msra.mxu0 0
    %111 = vmatprep.subr.bf16.mxu0 0
    %112 = vmatpush1.bf16.msra.mxu0 0
    %113 = vmatprep.subr.bf16.mxu0 0
    %114 = vmatpush1.bf16.msra.mxu0 0
    %115 = vmatprep.subr.bf16.mxu0 0
    %116 = vmatpush1.bf16.msra.mxu0 0
    %117 = vmatprep.subr.bf16.mxu0 0
    %118 = vmatpush1.bf16.msra.mxu0 0
    %119 = vmatprep.subr.bf16.mxu0 0
    %120 = vmatpush1.bf16.msra.mxu0 0
    %121 = vmatprep.mubr.bf16.mxu0 0
    %122 = vmatmul.mubr.bf16.gmra.mrb[0].mxu0 %v84
    %v123 = vpop.f32.mrb[0].mxu0
    %v124 = vadd.f32 %v58, %v123
    %v125 = vpop.f32.mrb[0].mxu0
    %v126 = vpop.f32.mrb[0].mxu0
    %v127 = vadd.f32 %v58, %v126
    %v128 = vpop.f32.mrb[0].mxu0
    %129 = vmatprep.mubr.bf16.mxu0 0
    %130 = vmatmul.mubr.bf16.gmra.mrb[0].mxu0 %v87
    %v131 = vpop.f32.mrb[0].mxu0
    %v132 = vadd.f32 %v58, %v131
    %v133 = vpop.f32.mrb[0].mxu0
    %v134 = vpop.f32.mrb[0].mxu0
    %v135 = vadd.f32 %v58, %v134
    %v136 = vpop.f32.mrb[0].mxu0
    %137 = vdwg.mxu0
    %v144 = vunpack.c.l.b16 %v37
    %v145 = vunpack.c.l.b16 %v38
    %v146 = vunpack.c.l.b16 %v39
    %v147 = vunpack.c.l.b16 %v40
    %v148 = vunpack.c.l.b16 %v41
    %v149 = vunpack.c.l.b16 %v42
    %v150 = vpack.c.b16 %v145, %v144
    %v151 = vpack.c.b16 %v147, %v146
    %v152 = vpack.c.b16 %v149, %v148
    %vm154 = vcmask 130048
    %v156 = vsel %vm154, %v150, 0
    %v159 = vsel %vm154, %v151, 0
    %v162 = vsel %vm154, %v152, 0
    %164 = vmatprep.subr.bf16.mxu0 0
    %165 = vmatpush1.bf16.msra.mxu0 %v68
    %166 = vmatprep.subr.bf16.mxu0 0
    %167 = vmatpush1.bf16.msra.mxu0 0
    %168 = vmatprep.subr.bf16.mxu0 0
    %169 = vmatpush1.bf16.msra.mxu0 0
    %170 = vmatprep.subr.bf16.mxu0 0
    %171 = vmatpush1.bf16.msra.mxu0 0
    %172 = vmatprep.subr.bf16.mxu0 0
    %173 = vmatpush1.bf16.msra.mxu0 0
    %174 = vmatprep.subr.bf16.mxu0 0
    %175 = vmatpush1.bf16.msra.mxu0 0
    %176 = vmatprep.subr.bf16.mxu0 0
    %177 = vmatpush1.bf16.msra.mxu0 0
    %178 = vmatprep.subr.bf16.mxu0 0
    %179 = vmatpush1.bf16.msra.mxu0 0
    %180 = vmatprep.subr.bf16.mxu0 0
    %181 = vmatpush1.bf16.msra.mxu0 0
    %182 = vmatprep.subr.bf16.mxu0 0
    %183 = vmatpush1.bf16.msra.mxu0 0
    %184 = vmatprep.subr.bf16.mxu0 0
    %185 = vmatpush1.bf16.msra.mxu0 0
    %186 = vmatprep.subr.bf16.mxu0 0
    %187 = vmatpush1.bf16.msra.mxu0 0
    %188 = vmatprep.subr.bf16.mxu0 0
    %189 = vmatpush1.bf16.msra.mxu0 0
    %190 = vmatprep.subr.bf16.mxu0 0
    %191 = vmatpush1.bf16.msra.mxu0 0
    %192 = vmatprep.subr.bf16.mxu0 0
    %193 = vmatpush1.bf16.msra.mxu0 0
    %194 = vmatprep.subr.bf16.mxu0 0
    %195 = vmatpush1.bf16.msra.mxu0 0
    %196 = vmatprep.mubr.bf16.mxu0 0
    %197 = vmatmul.mubr.bf16.gmra.mrb[0].mxu0 %v156
    %v198 = vpop.f32.mrb[0].mxu0
    %v199 = vadd.f32 0.0, %v198
    %v200 = vpop.f32.mrb[0].mxu0
    %v201 = vpop.f32.mrb[0].mxu0
    %v202 = vadd.f32 0.0, %v201
    %v203 = vpop.f32.mrb[0].mxu0
    %204 = vmatprep.mubr.bf16.mxu0 0
    %205 = vmatmul.mubr.bf16.gmra.mrb[0].mxu0 %v159
    %v206 = vpop.f32.mrb[0].mxu0
    %v207 = vadd.f32 0.0, %v206
    %v208 = vpop.f32.mrb[0].mxu0
    %v209 = vpop.f32.mrb[0].mxu0
    %v210 = vadd.f32 0.0, %v209
    %v211 = vpop.f32.mrb[0].mxu0
    %212 = vmatprep.mubr.bf16.mxu0 0
    %213 = vmatmul.mubr.bf16.gmra.mrb[0].mxu0 %v162
    %v214 = vpop.f32.mrb[0].mxu0
    %v215 = vadd.f32 0.0, %v214
    %v216 = vpop.f32.mrb[0].mxu0
    %v217 = vpop.f32.mrb[0].mxu0
    %v218 = vadd.f32 0.0, %v217
    %v219 = vpop.f32.mrb[0].mxu0
    %220 = vdwg.mxu0
    %v227 = vunpack.c.l.b16 %v43
    %v228 = vunpack.c.l.b16 %v44
    %v229 = vunpack.c.l.b16 %v45
    %v230 = vunpack.c.l.b16 %v46
    %v231 = vunpack.c.l.b16 %v47
    %v232 = vunpack.c.l.b16 %v48
    %v233 = vpack.c.b16 %v228, %v227
    %v234 = vpack.c.b16 %v230, %v229
    %v235 = vpack.c.b16 %v232, %v231
    %v238 = vsel %vm154, %v233, 0
    %v241 = vsel %vm154, %v234, 0
    %v244 = vsel %vm154, %v235, 0
    %246 = vmatprep.subr.bf16.mxu0 0
    %247 = vmatpush1.bf16.msra.mxu0 %v69
    %248 = vmatprep.subr.bf16.mxu0 0
    %249 = vmatpush1.bf16.msra.mxu0 0
    %250 = vmatprep.subr.bf16.mxu0 0
    %251 = vmatpush1.bf16.msra.mxu0 0
    %252 = vmatprep.subr.bf16.mxu0 0
    %253 = vmatpush1.bf16.msra.mxu0 0
    %254 = vmatprep.subr.bf16.mxu0 0
    %255 = vmatpush1.bf16.msra.mxu0 0
    %256 = vmatprep.subr.bf16.mxu0 0
    %257 = vmatpush1.bf16.msra.mxu0 0
    %258 = vmatprep.subr.bf16.mxu0 0
    %259 = vmatpush1.bf16.msra.mxu0 0
    %260 = vmatprep.subr.bf16.mxu0 0
    %261 = vmatpush1.bf16.msra.mxu0 0
    %262 = vmatprep.subr.bf16.mxu0 0
    %263 = vmatpush1.bf16.msra.mxu0 0
    %264 = vmatprep.subr.bf16.mxu0 0
    %265 = vmatpush1.bf16.msra.mxu0 0
    %266 = vmatprep.subr.bf16.mxu0 0
    %267 = vmatpush1.bf16.msra.mxu0 0
    %268 = vmatprep.subr.bf16.mxu0 0
    %269 = vmatpush1.bf16.msra.mxu0 0
    %270 = vmatprep.subr.bf16.mxu0 0
    %271 = vmatpush1.bf16.msra.mxu0 0
    %272 = vmatprep.subr.bf16.mxu0 0
    %273 = vmatpush1.bf16.msra.mxu0 0
    %274 = vmatprep.subr.bf16.mxu0 0
    %275 = vmatpush1.bf16.msra.mxu0 0
    %276 = vmatprep.subr.bf16.mxu0 0
    %277 = vmatpush1.bf16.msra.mxu0 0
    %278 = vmatprep.mubr.bf16.mxu0 0
    %279 = vmatmul.mubr.bf16.gmra.mrb[0].mxu0 %v238
    %v280 = vpop.f32.mrb[0].mxu0
    %v281 = vadd.f32 0.0, %v280
    %v282 = vpop.f32.mrb[0].mxu0
    %v283 = vpop.f32.mrb[0].mxu0
    %v284 = vadd.f32 0.0, %v283
    %v285 = vpop.f32.mrb[0].mxu0
    %286 = vmatprep.mubr.bf16.mxu0 0
    %287 = vmatmul.mubr.bf16.gmra.mrb[0].mxu0 %v241
    %v288 = vpop.f32.mrb[0].mxu0
    %v289 = vadd.f32 0.0, %v288
    %v290 = vpop.f32.mrb[0].mxu0
    %v291 = vpop.f32.mrb[0].mxu0
    %v292 = vadd.f32 0.0, %v291
    %v293 = vpop.f32.mrb[0].mxu0
    %294 = vmatprep.mubr.bf16.mxu0 0
    %295 = vmatmul.mubr.bf16.gmra.mrb[0].mxu0 %v244
    %v296 = vpop.f32.mrb[0].mxu0
    %v297 = vadd.f32 0.0, %v296
    %v298 = vpop.f32.mrb[0].mxu0
    %v299 = vpop.f32.mrb[0].mxu0
    %v300 = vadd.f32 0.0, %v299
    %v301 = vpop.f32.mrb[0].mxu0
    %302 = vdwg.mxu0
    %v303 = vpack.c.bf16 %v202, %v199
    %v304 = vpack.c.bf16 %v284, %v281
    %v305 = vld [vmem:[#allocation2 + $0x10] sm:$0xf]
    %v306 = vld [vmem:[#allocation2 + $0x14] sm:$0xf]
    %v307 = vld [vmem:[#allocation2 + $0x18] sm:$0xf]
    %v308 = vld [vmem:[#allocation2 + $0x1c] sm:$0xf]
    %v313 = vunpack.c.l.b16 %v305
    %v314 = vunpack.c.l.b16 %v306
    %v315 = vunpack.c.l.b16 %v307
    %v316 = vunpack.c.l.b16 %v308
    %v317 = vpack.c.b16 %v314, %v313
    %v318 = vpack.c.b16 %v316, %v315
    %v322 = vsel %vm82, %v303, 0
    %v325 = vsel %vm82, %v304, 0
    %327 = vmatprep.subr.bf16.mxu0 0
    %328 = vmatpush1.bf16.msra.mxu0 %v317
    %329 = vmatprep.subr.bf16.mxu0 0
    %330 = vmatpush1.bf16.msra.mxu0 %v318
    %331 = vmatprep.subr.bf16.mxu0 0
    %332 = vmatpush1.bf16.msra.mxu0 0
    %333 = vmatprep.subr.bf16.mxu0 0
    %334 = vmatpush1.bf16.msra.mxu0 0
    %335 = vmatprep.subr.bf16.mxu0 0
    %336 = vmatpush1.bf16.msra.mxu0 0
    %337 = vmatprep.subr.bf16.mxu0 0
    %338 = vmatpush1.bf16.msra.mxu0 0
    %339 = vmatprep.subr.bf16.mxu0 0
    %340 = vmatpush1.bf16.msra.mxu0 0
    %341 = vmatprep.subr.bf16.mxu0 0
    %342 = vmatpush1.bf16.msra.mxu0 0
    %343 = vmatprep.subr.bf16.mxu0 0
    %344 = vmatpush1.bf16.msra.mxu0 0
    %345 = vmatprep.subr.bf16.mxu0 0
    %346 = vmatpush1.bf16.msra.mxu0 0
    %347 = vmatprep.subr.bf16.mxu0 0
    %348 = vmatpush1.bf16.msra.mxu0 0
    %349 = vmatprep.subr.bf16.mxu0 0
    %350 = vmatpush1.bf16.msra.mxu0 0
    %351 = vmatprep.subr.bf16.mxu0 0
    %352 = vmatpush1.bf16.msra.mxu0 0
    %353 = vmatprep.subr.bf16.mxu0 0
    %354 = vmatpush1.bf16.msra.mxu0 0
    %355 = vmatprep.subr.bf16.mxu0 0
    %356 = vmatpush1.bf16.msra.mxu0 0
    %357 = vmatprep.subr.bf16.mxu0 0
    %358 = vmatpush1.bf16.msra.mxu0 0
    %359 = vmatprep.mubr.bf16.mxu0 0
    %360 = vmatmul.mubr.bf16.gmra.mrb[0].mxu0 %v322
    %v361 = vpop.f32.mrb[0].mxu0
    %v362 = vadd.f32 0.0, %v361
    %v363 = vpop.f32.mrb[0].mxu0
    %v364 = vpop.f32.mrb[0].mxu0
    %v365 = vadd.f32 0.0, %v364
    %v366 = vpop.f32.mrb[0].mxu0
    %367 = vmatprep.mubr.bf16.mxu0 0
    %368 = vmatmul.mubr.bf16.gmra.mrb[0].mxu0 %v325
    %v369 = vpop.f32.mrb[0].mxu0
    %v370 = vadd.f32 0.0, %v369
    %v371 = vpop.f32.mrb[0].mxu0
    %v372 = vpop.f32.mrb[0].mxu0
    %v373 = vadd.f32 0.0, %v372
    %v374 = vpop.f32.mrb[0].mxu0
    %375 = vdwg.mxu0
    %v376 = vadd.f32 %v124, %v362
    %v377 = vadd.f32 %v127, %v365
    %v378 = vadd.f32 %v132, %v370
    %v379 = vadd.f32 %v135, %v373
    %380 = vmatprep.subr.bf16.mxu0 0
    %381 = vmatpush1.bf16.msra.mxu0 %v303
    %382 = vmatprep.subr.bf16.mxu0 0
    %383 = vmatpush1.bf16.msra.mxu0 0
    %384 = vmatprep.subr.bf16.mxu0 0
    %385 = vmatpush1.bf16.msra.mxu0 0
    %386 = vmatprep.subr.bf16.mxu0 0
    %387 = vmatpush1.bf16.msra.mxu0 0
    %388 = vmatprep.subr.bf16.mxu0 0
    %389 = vmatpush1.bf16.msra.mxu0 0
    %390 = vmatprep.subr.bf16.mxu0 0
    %391 = vmatpush1.bf16.msra.mxu0 0
    %392 = vmatprep.subr.bf16.mxu0 0
    %393 = vmatpush1.bf16.msra.mxu0 0
    %394 = vmatprep.subr.bf16.mxu0 0
    %395 = vmatpush1.bf16.msra.mxu0 0
    %396 = vmatprep.subr.bf16.mxu0 0
    %397 = vmatpush1.bf16.msra.mxu0 0
    %398 = vmatprep.subr.bf16.mxu0 0
    %399 = vmatpush1.bf16.msra.mxu0 0
    %400 = vmatprep.subr.bf16.mxu0 0
    %401 = vmatpush1.bf16.msra.mxu0 0
    %402 = vmatprep.subr.bf16.mxu0 0
    %403 = vmatpush1.bf16.msra.mxu0 0
    %404 = vmatprep.subr.bf16.mxu0 0
    %405 = vmatpush1.bf16.msra.mxu0 0
    %406 = vmatprep.subr.bf16.mxu0 0
    %407 = vmatpush1.bf16.msra.mxu0 0
    %408 = vmatprep.subr.bf16.mxu0 0
    %409 = vmatpush1.bf16.msra.mxu0 0
    %410 = vmatprep.subr.bf16.mxu0 0
    %411 = vmatpush1.bf16.msra.mxu0 0
    %412 = vmatprep.mubr.bf16.mxu0 0
    %413 = vmatmul.mubr.bf16.gmra.mrb[0].mxu0 %v156
    %v414 = vpop.f32.mrb[0].mxu0
    %v415 = vadd.f32 0.0, %v414
    %v416 = vpop.f32.mrb[0].mxu0
    %v417 = vpop.f32.mrb[0].mxu0
    %v418 = vadd.f32 0.0, %v417
    %v419 = vpop.f32.mrb[0].mxu0
    %420 = vdwg.mxu0
    %421 = vmatprep.subr.bf16.mxu0 0
    %422 = vmatpush1.bf16.msra.mxu0 %v304
    %423 = vmatprep.subr.bf16.mxu0 0
    %424 = vmatpush1.bf16.msra.mxu0 0
    %425 = vmatprep.subr.bf16.mxu0 0
    %426 = vmatpush1.bf16.msra.mxu0 0
    %427 = vmatprep.subr.bf16.mxu0 0
    %428 = vmatpush1.bf16.msra.mxu0 0
    %429 = vmatprep.subr.bf16.mxu0 0
    %430 = vmatpush1.bf16.msra.mxu0 0
    %431 = vmatprep.subr.bf16.mxu0 0
    %432 = vmatpush1.bf16.msra.mxu0 0
    %433 = vmatprep.subr.bf16.mxu0 0
    %434 = vmatpush1.bf16.msra.mxu0 0
    %435 = vmatprep.subr.bf16.mxu0 0
    %436 = vmatpush1.bf16.msra.mxu0 0
    %437 = vmatprep.subr.bf16.mxu0 0
    %438 = vmatpush1.bf16.msra.mxu0 0
    %439 = vmatprep.subr.bf16.mxu0 0
    %440 = vmatpush1.bf16.msra.mxu0 0
    %441 = vmatprep.subr.bf16.mxu0 0
    %442 = vmatpush1.bf16.msra.mxu0 0
    %443 = vmatprep.subr.bf16.mxu0 0
    %444 = vmatpush1.bf16.msra.mxu0 0
    %445 = vmatprep.subr.bf16.mxu0 0
    %446 = vmatpush1.bf16.msra.mxu0 0
    %447 = vmatprep.subr.bf16.mxu0 0
    %448 = vmatpush1.bf16.msra.mxu0 0
    %449 = vmatprep.subr.bf16.mxu0 0
    %450 = vmatpush1.bf16.msra.mxu0 0
    %451 = vmatprep.subr.bf16.mxu0 0
    %452 = vmatpush1.bf16.msra.mxu0 0
    %453 = vmatprep.mubr.bf16.mxu0 0
    %454 = vmatmul.mubr.bf16.gmra.mrb[0].mxu0 %v238
    %v455 = vpop.f32.mrb[0].mxu0
    %v456 = vadd.f32 0.0, %v455
    %v457 = vpop.f32.mrb[0].mxu0
    %v458 = vpop.f32.mrb[0].mxu0
    %v459 = vadd.f32 0.0, %v458
    %v460 = vpop.f32.mrb[0].mxu0
    %461 = vdwg.mxu0
    %v462 = vpack.c.bf16 %v418, %v415
    %v463 = vpack.c.bf16 %v459, %v456
    %v464 = vld [vmem:[#allocation2 + $0x20] sm:$0xf]
    %v465 = vld [vmem:[#allocation2 + $0x24] sm:$0xf]
    %v466 = vld [vmem:[#allocation2 + $0x28] sm:$0xf]
    %v467 = vld [vmem:[#allocation2 + $0x2c] sm:$0xf]
    %v472 = vunpack.c.l.b16 %v464
    %v473 = vunpack.c.l.b16 %v465
    %v474 = vunpack.c.l.b16 %v466
    %v475 = vunpack.c.l.b16 %v467
    %v476 = vpack.c.b16 %v473, %v472
    %v477 = vpack.c.b16 %v475, %v474
    %v481 = vsel %vm82, %v462, 0
    %v484 = vsel %vm82, %v463, 0
    %486 = vmatprep.subr.bf16.mxu0 0
    %487 = vmatpush1.bf16.msra.mxu0 %v476
    %488 = vmatprep.subr.bf16.mxu0 0
    %489 = vmatpush1.bf16.msra.mxu0 %v477
    %490 = vmatprep.subr.bf16.mxu0 0
    %491 = vmatpush1.bf16.msra.mxu0 0
    %492 = vmatprep.subr.bf16.mxu0 0
    %493 = vmatpush1.bf16.msra.mxu0 0
    %494 = vmatprep.subr.bf16.mxu0 0
    %495 = vmatpush1.bf16.msra.mxu0 0
    %496 = vmatprep.subr.bf16.mxu0 0
    %497 = vmatpush1.bf16.msra.mxu0 0
    %498 = vmatprep.subr.bf16.mxu0 0
    %499 = vmatpush1.bf16.msra.mxu0 0
    %500 = vmatprep.subr.bf16.mxu0 0
    %501 = vmatpush1.bf16.msra.mxu0 0
    %502 = vmatprep.subr.bf16.mxu0 0
    %503 = vmatpush1.bf16.msra.mxu0 0
    %504 = vmatprep.subr.bf16.mxu0 0
    %505 = vmatpush1.bf16.msra.mxu0 0
    %506 = vmatprep.subr.bf16.mxu0 0
    %507 = vmatpush1.bf16.msra.mxu0 0
    %508 = vmatprep.subr.bf16.mxu0 0
    %509 = vmatpush1.bf16.msra.mxu0 0
    %510 = vmatprep.subr.bf16.mxu0 0
    %511 = vmatpush1.bf16.msra.mxu0 0
    %512 = vmatprep.subr.bf16.mxu0 0
    %513 = vmatpush1.bf16.msra.mxu0 0
    %514 = vmatprep.subr.bf16.mxu0 0
    %515 = vmatpush1.bf16.msra.mxu0 0
    %516 = vmatprep.subr.bf16.mxu0 0
    %517 = vmatpush1.bf16.msra.mxu0 0
    %518 = vmatprep.mubr.bf16.mxu0 0
    %519 = vmatmul.mubr.bf16.gmra.mrb[0].mxu0 %v481
    %v520 = vpop.f32.mrb[0].mxu0
    %v521 = vadd.f32 0.0, %v520
    %v522 = vpop.f32.mrb[0].mxu0
    %v523 = vpop.f32.mrb[0].mxu0
    %v524 = vadd.f32 0.0, %v523
    %v525 = vpop.f32.mrb[0].mxu0
    %526 = vmatprep.mubr.bf16.mxu0 0
    %527 = vmatmul.mubr.bf16.gmra.mrb[0].mxu0 %v484
    %v528 = vpop.f32.mrb[0].mxu0
    %v529 = vadd.f32 0.0, %v528
    %v530 = vpop.f32.mrb[0].mxu0
    %v531 = vpop.f32.mrb[0].mxu0
    %v532 = vadd.f32 0.0, %v531
    %v533 = vpop.f32.mrb[0].mxu0
    %534 = vdwg.mxu0
    %v535 = vadd.f32 %v376, %v521
    %v536 = vadd.f32 %v377, %v524
    %v537 = vadd.f32 %v378, %v529
    %v538 = vadd.f32 %v379, %v532
    %v539 = vpack.c.bf16 %v210, %v207
    %v540 = vpack.c.bf16 %v292, %v289
    %v541 = vld [vmem:[#allocation2 + $0x30] sm:$0xf]
    %v542 = vld [vmem:[#allocation2 + $0x34] sm:$0xf]
    %v543 = vld [vmem:[#allocation2 + $0x38] sm:$0xf]
    %v544 = vld [vmem:[#allocation2 + $0x3c] sm:$0xf]
    %v549 = vunpack.c.l.b16 %v541
    %v550 = vunpack.c.l.b16 %v542
    %v551 = vunpack.c.l.b16 %v543
    %v552 = vunpack.c.l.b16 %v544
    %v553 = vpack.c.b16 %v550, %v549
    %v554 = vpack.c.b16 %v552, %v551
    %v558 = vsel %vm82, %v539, 0
    %v561 = vsel %vm82, %v540, 0
    %563 = vmatprep.subr.bf16.mxu0 0
    %564 = vmatpush1.bf16.msra.mxu0 %v553
    %565 = vmatprep.subr.bf16.mxu0 0
    %566 = vmatpush1.bf16.msra.mxu0 %v554
    %567 = vmatprep.subr.bf16.mxu0 0
    %568 = vmatpush1.bf16.msra.mxu0 0
    %569 = vmatprep.subr.bf16.mxu0 0
    %570 = vmatpush1.bf16.msra.mxu0 0
    %571 = vmatprep.subr.bf16.mxu0 0
    %572 = vmatpush1.bf16.msra.mxu0 0
    %573 = vmatprep.subr.bf16.mxu0 0
    %574 = vmatpush1.bf16.msra.mxu0 0
    %575 = vmatprep.subr.bf16.mxu0 0
    %576 = vmatpush1.bf16.msra.mxu0 0
    %577 = vmatprep.subr.bf16.mxu0 0
    %578 = vmatpush1.bf16.msra.mxu0 0
    %579 = vmatprep.subr.bf16.mxu0 0
    %580 = vmatpush1.bf16.msra.mxu0 0
    %581 = vmatprep.subr.bf16.mxu0 0
    %582 = vmatpush1.bf16.msra.mxu0 0
    %583 = vmatprep.subr.bf16.mxu0 0
    %584 = vmatpush1.bf16.msra.mxu0 0
    %585 = vmatprep.subr.bf16.mxu0 0
    %586 = vmatpush1.bf16.msra.mxu0 0
    %587 = vmatprep.subr.bf16.mxu0 0
    %588 = vmatpush1.bf16.msra.mxu0 0
    %589 = vmatprep.subr.bf16.mxu0 0
    %590 = vmatpush1.bf16.msra.mxu0 0
    %591 = vmatprep.subr.bf16.mxu0 0
    %592 = vmatpush1.bf16.msra.mxu0 0
    %593 = vmatprep.subr.bf16.mxu0 0
    %594 = vmatpush1.bf16.msra.mxu0 0
    %595 = vmatprep.mubr.bf16.mxu0 0
    %596 = vmatmul.mubr.bf16.gmra.mrb[0].mxu0 %v558
    %v597 = vpop.f32.mrb[0].mxu0
    %v598 = vadd.f32 0.0, %v597
    %v599 = vpop.f32.mrb[0].mxu0
    %v600 = vpop.f32.mrb[0].mxu0
    %v601 = vadd.f32 0.0, %v600
    %v602 = vpop.f32.mrb[0].mxu0
    %603 = vmatprep.mubr.bf16.mxu0 0
    %604 = vmatmul.mubr.bf16.gmra.mrb[0].mxu0 %v561
    %v605 = vpop.f32.mrb[0].mxu0
    %v606 = vadd.f32 0.0, %v605
    %v607 = vpop.f32.mrb[0].mxu0
    %v608 = vpop.f32.mrb[0].mxu0
    %v609 = vadd.f32 0.0, %v608
    %v610 = vpop.f32.mrb[0].mxu0
    %611 = vdwg.mxu0
    %v612 = vadd.f32 %v535, %v598
    %v613 = vadd.f32 %v536, %v601
    %v614 = vadd.f32 %v537, %v606
    %v615 = vadd.f32 %v538, %v609
    %616 = vmatprep.subr.bf16.mxu0 0
    %617 = vmatpush1.bf16.msra.mxu0 %v539
    %618 = vmatprep.subr.bf16.mxu0 0
    %619 = vmatpush1.bf16.msra.mxu0 0
    %620 = vmatprep.subr.bf16.mxu0 0
    %621 = vmatpush1.bf16.msra.mxu0 0
    %622 = vmatprep.subr.bf16.mxu0 0
    %623 = vmatpush1.bf16.msra.mxu0 0
    %624 = vmatprep.subr.bf16.mxu0 0
    %625 = vmatpush1.bf16.msra.mxu0 0
    %626 = vmatprep.subr.bf16.mxu0 0
    %627 = vmatpush1.bf16.msra.mxu0 0
    %628 = vmatprep.subr.bf16.mxu0 0
    %629 = vmatpush1.bf16.msra.mxu0 0
    %630 = vmatprep.subr.bf16.mxu0 0
    %631 = vmatpush1.bf16.msra.mxu0 0
    %632 = vmatprep.subr.bf16.mxu0 0
    %633 = vmatpush1.bf16.msra.mxu0 0
    %634 = vmatprep.subr.bf16.mxu0 0
    %635 = vmatpush1.bf16.msra.mxu0 0
    %636 = vmatprep.subr.bf16.mxu0 0
    %637 = vmatpush1.bf16.msra.mxu0 0
    %638 = vmatprep.subr.bf16.mxu0 0
    %639 = vmatpush1.bf16.msra.mxu0 0
    %640 = vmatprep.subr.bf16.mxu0 0
    %641 = vmatpush1.bf16.msra.mxu0 0
    %642 = vmatprep.subr.bf16.mxu0 0
    %643 = vmatpush1.bf16.msra.mxu0 0
    %644 = vmatprep.subr.bf16.mxu0 0
    %645 = vmatpush1.bf16.msra.mxu0 0
    %646 = vmatprep.subr.bf16.mxu0 0
    %647 = vmatpush1.bf16.msra.mxu0 0
    %648 = vmatprep.mubr.bf16.mxu0 0
    %649 = vmatmul.mubr.bf16.gmra.mrb[0].mxu0 %v159
    %v650 = vpop.f32.mrb[0].mxu0
    %v651 = vadd.f32 0.0, %v650
    %v652 = vpop.f32.mrb[0].mxu0
    %v653 = vpop.f32.mrb[0].mxu0
    %v654 = vadd.f32 0.0, %v653
    %v655 = vpop.f32.mrb[0].mxu0
    %656 = vdwg.mxu0
    %657 = vmatprep.subr.bf16.mxu0 0
    %658 = vmatpush1.bf16.msra.mxu0 %v540
    %659 = vmatprep.subr.bf16.mxu0 0
    %660 = vmatpush1.bf16.msra.mxu0 0
    %661 = vmatprep.subr.bf16.mxu0 0
    %662 = vmatpush1.bf16.msra.mxu0 0
    %663 = vmatprep.subr.bf16.mxu0 0
    %664 = vmatpush1.bf16.msra.mxu0 0
    %665 = vmatprep.subr.bf16.mxu0 0
    %666 = vmatpush1.bf16.msra.mxu0 0
    %667 = vmatprep.subr.bf16.mxu0 0
    %668 = vmatpush1.bf16.msra.mxu0 0
    %669 = vmatprep.subr.bf16.mxu0 0
    %670 = vmatpush1.bf16.msra.mxu0 0
    %671 = vmatprep.subr.bf16.mxu0 0
    %672 = vmatpush1.bf16.msra.mxu0 0
    %673 = vmatprep.subr.bf16.mxu0 0
    %674 = vmatpush1.bf16.msra.mxu0 0
    %675 = vmatprep.subr.bf16.mxu0 0
    %676 = vmatpush1.bf16.msra.mxu0 0
    %677 = vmatprep.subr.bf16.mxu0 0
    %678 = vmatpush1.bf16.msra.mxu0 0
    %679 = vmatprep.subr.bf16.mxu0 0
    %680 = vmatpush1.bf16.msra.mxu0 0
    %681 = vmatprep.subr.bf16.mxu0 0
    %682 = vmatpush1.bf16.msra.mxu0 0
    %683 = vmatprep.subr.bf16.mxu0 0
    %684 = vmatpush1.bf16.msra.mxu0 0
    %685 = vmatprep.subr.bf16.mxu0 0
    %686 = vmatpush1.bf16.msra.mxu0 0
    %687 = vmatprep.subr.bf16.mxu0 0
    %688 = vmatpush1.bf16.msra.mxu0 0
    %689 = vmatprep.mubr.bf16.mxu0 0
    %690 = vmatmul.mubr.bf16.gmra.mrb[0].mxu0 %v241
    %v691 = vpop.f32.mrb[0].mxu0
    %v692 = vadd.f32 0.0, %v691
    %v693 = vpop.f32.mrb[0].mxu0
    %v694 = vpop.f32.mrb[0].mxu0
    %v695 = vadd.f32 0.0, %v694
    %v696 = vpop.f32.mrb[0].mxu0
    %697 = vdwg.mxu0
    %v698 = vpack.c.bf16 %v654, %v651
    %v699 = vpack.c.bf16 %v695, %v692
    %v700 = vld [vmem:[#allocation2 + $0x40] sm:$0xf]
    %v701 = vld [vmem:[#allocation2 + $0x44] sm:$0xf]
    %v702 = vld [vmem:[#allocation2 + $0x48] sm:$0xf]
    %v703 = vld [vmem:[#allocation2 + $0x4c] sm:$0xf]
    %v708 = vunpack.c.l.b16 %v700
    %v709 = vunpack.c.l.b16 %v701
    %v710 = vunpack.c.l.b16 %v702
    %v711 = vunpack.c.l.b16 %v703
    %v712 = vpack.c.b16 %v709, %v708
    %v713 = vpack.c.b16 %v711, %v710
    %v717 = vsel %vm82, %v698, 0
    %v720 = vsel %vm82, %v699, 0
    %722 = vmatprep.subr.bf16.mxu0 0
    %723 = vmatpush1.bf16.msra.mxu0 %v712
    %724 = vmatprep.subr.bf16.mxu0 0
    %725 = vmatpush1.bf16.msra.mxu0 %v713
    %726 = vmatprep.subr.bf16.mxu0 0
    %727 = vmatpush1.bf16.msra.mxu0 0
    %728 = vmatprep.subr.bf16.mxu0 0
    %729 = vmatpush1.bf16.msra.mxu0 0
    %730 = vmatprep.subr.bf16.mxu0 0
    %731 = vmatpush1.bf16.msra.mxu0 0
    %732 = vmatprep.subr.bf16.mxu0 0
    %733 = vmatpush1.bf16.msra.mxu0 0
    %734 = vmatprep.subr.bf16.mxu0 0
    %735 = vmatpush1.bf16.msra.mxu0 0
    %736 = vmatprep.subr.bf16.mxu0 0
    %737 = vmatpush1.bf16.msra.mxu0 0
    %738 = vmatprep.subr.bf16.mxu0 0
    %739 = vmatpush1.bf16.msra.mxu0 0
    %740 = vmatprep.subr.bf16.mxu0 0
    %741 = vmatpush1.bf16.msra.mxu0 0
    %742 = vmatprep.subr.bf16.mxu0 0
    %743 = vmatpush1.bf16.msra.mxu0 0
    %744 = vmatprep.subr.bf16.mxu0 0
    %745 = vmatpush1.bf16.msra.mxu0 0
    %746 = vmatprep.subr.bf16.mxu0 0
    %747 = vmatpush1.bf16.msra.mxu0 0
    %748 = vmatprep.subr.bf16.mxu0 0
    %749 = vmatpush1.bf16.msra.mxu0 0
    %750 = vmatprep.subr.bf16.mxu0 0
    %751 = vmatpush1.bf16.msra.mxu0 0
    %752 = vmatprep.subr.bf16.mxu0 0
    %753 = vmatpush1.bf16.msra.mxu0 0
    %754 = vmatprep.mubr.bf16.mxu0 0
    %755 = vmatmul.mubr.bf16.gmra.mrb[0].mxu0 %v717
    %v756 = vpop.f32.mrb[0].mxu0
    %v757 = vadd.f32 0.0, %v756
    %v758 = vpop.f32.mrb[0].mxu0
    %v759 = vpop.f32.mrb[0].mxu0
    %v760 = vadd.f32 0.0, %v759
    %v761 = vpop.f32.mrb[0].mxu0
    %762 = vmatprep.mubr.bf16.mxu0 0
    %763 = vmatmul.mubr.bf16.gmra.mrb[0].mxu0 %v720
    %v764 = vpop.f32.mrb[0].mxu0
    %v765 = vadd.f32 0.0, %v764
    %v766 = vpop.f32.mrb[0].mxu0
    %v767 = vpop.f32.mrb[0].mxu0
    %v768 = vadd.f32 0.0, %v767
    %v769 = vpop.f32.mrb[0].mxu0
    %770 = vdwg.mxu0
    %v771 = vadd.f32 %v612, %v757
    %v772 = vadd.f32 %v613, %v760
    %v773 = vadd.f32 %v614, %v765
    %v774 = vadd.f32 %v615, %v768
    %v775 = vpack.c.bf16 %v218, %v215
    %v776 = vpack.c.bf16 %v300, %v297
    %v777 = vld [vmem:[#allocation2 + $0x50] sm:$0xf]
    %v778 = vld [vmem:[#allocation2 + $0x54] sm:$0xf]
    %v779 = vld [vmem:[#allocation2 + $0x58] sm:$0xf]
    %v780 = vld [vmem:[#allocation2 + $0x5c] sm:$0xf]
    %v785 = vunpack.c.l.b16 %v777
    %v786 = vunpack.c.l.b16 %v778
    %v787 = vunpack.c.l.b16 %v779
    %v788 = vunpack.c.l.b16 %v780
    %v789 = vpack.c.b16 %v786, %v785
    %v790 = vpack.c.b16 %v788, %v787
    %v794 = vsel %vm82, %v775, 0
    %v797 = vsel %vm82, %v776, 0
    %799 = vmatprep.subr.bf16.mxu0 0
    %800 = vmatpush1.bf16.msra.mxu0 %v789
    %801 = vmatprep.subr.bf16.mxu0 0
    %802 = vmatpush1.bf16.msra.mxu0 %v790
    %803 = vmatprep.subr.bf16.mxu0 0
    %804 = vmatpush1.bf16.msra.mxu0 0
    %805 = vmatprep.subr.bf16.mxu0 0
    %806 = vmatpush1.bf16.msra.mxu0 0
    %807 = vmatprep.subr.bf16.mxu0 0
    %808 = vmatpush1.bf16.msra.mxu0 0
    %809 = vmatprep.subr.bf16.mxu0 0
    %810 = vmatpush1.bf16.msra.mxu0 0
    %811 = vmatprep.subr.bf16.mxu0 0
    %812 = vmatpush1.bf16.msra.mxu0 0
    %813 = vmatprep.subr.bf16.mxu0 0
    %814 = vmatpush1.bf16.msra.mxu0 0
    %815 = vmatprep.subr.bf16.mxu0 0
    %816 = vmatpush1.bf16.msra.mxu0 0
    %817 = vmatprep.subr.bf16.mxu0 0
    %818 = vmatpush1.bf16.msra.mxu0 0
    %819 = vmatprep.subr.bf16.mxu0 0
    %820 = vmatpush1.bf16.msra.mxu0 0
    %821 = vmatprep.subr.bf16.mxu0 0
    %822 = vmatpush1.bf16.msra.mxu0 0
    %823 = vmatprep.subr.bf16.mxu0 0
    %824 = vmatpush1.bf16.msra.mxu0 0
    %825 = vmatprep.subr.bf16.mxu0 0
    %826 = vmatpush1.bf16.msra.mxu0 0
    %827 = vmatprep.subr.bf16.mxu0 0
    %828 = vmatpush1.bf16.msra.mxu0 0
    %829 = vmatprep.subr.bf16.mxu0 0
    %830 = vmatpush1.bf16.msra.mxu0 0
    %831 = vmatprep.mubr.bf16.mxu0 0
    %832 = vmatmul.mubr.bf16.gmra.mrb[0].mxu0 %v794
    %v833 = vpop.f32.mrb[0].mxu0
    %v834 = vadd.f32 0.0, %v833
    %v835 = vpop.f32.mrb[0].mxu0
    %v836 = vpop.f32.mrb[0].mxu0
    %v837 = vadd.f32 0.0, %v836
    %v838 = vpop.f32.mrb[0].mxu0
    %839 = vmatprep.mubr.bf16.mxu0 0
    %840 = vmatmul.mubr.bf16.gmra.mrb[0].mxu0 %v797
    %v841 = vpop.f32.mrb[0].mxu0
    %v842 = vadd.f32 0.0, %v841
    %v843 = vpop.f32.mrb[0].mxu0
    %v844 = vpop.f32.mrb[0].mxu0
    %v845 = vadd.f32 0.0, %v844
    %v846 = vpop.f32.mrb[0].mxu0
    %847 = vdwg.mxu0
    %v848 = vadd.f32 %v771, %v834
    %v849 = vadd.f32 %v772, %v837
    %v850 = vadd.f32 %v773, %v842
    %v851 = vadd.f32 %v774, %v845
    %852 = vmatprep.subr.bf16.mxu0 0
    %853 = vmatpush1.bf16.msra.mxu0 %v775
    %854 = vmatprep.subr.bf16.mxu0 0
    %855 = vmatpush1.bf16.msra.mxu0 0
    %856 = vmatprep.subr.bf16.mxu0 0
    %857 = vmatpush1.bf16.msra.mxu0 0
    %858 = vmatprep.subr.bf16.mxu0 0
    %859 = vmatpush1.bf16.msra.mxu0 0
    %860 = vmatprep.subr.bf16.mxu0 0
    %861 = vmatpush1.bf16.msra.mxu0 0
    %862 = vmatprep.subr.bf16.mxu0 0
    %863 = vmatpush1.bf16.msra.mxu0 0
    %864 = vmatprep.subr.bf16.mxu0 0
    %865 = vmatpush1.bf16.msra.mxu0 0
    %866 = vmatprep.subr.bf16.mxu0 0
    %867 = vmatpush1.bf16.msra.mxu0 0
    %868 = vmatprep.subr.bf16.mxu0 0
    %869 = vmatpush1.bf16.msra.mxu0 0
    %870 = vmatprep.subr.bf16.mxu0 0
    %871 = vmatpush1.bf16.msra.mxu0 0
    %872 = vmatprep.subr.bf16.mxu0 0
    %873 = vmatpush1.bf16.msra.mxu0 0
    %874 = vmatprep.subr.bf16.mxu0 0
    %875 = vmatpush1.bf16.msra.mxu0 0
    %876 = vmatprep.subr.bf16.mxu0 0
    %877 = vmatpush1.bf16.msra.mxu0 0
    %878 = vmatprep.subr.bf16.mxu0 0
    %879 = vmatpush1.bf16.msra.mxu0 0
    %880 = vmatprep.subr.bf16.mxu0 0
    %881 = vmatpush1.bf16.msra.mxu0 0
    %882 = vmatprep.subr.bf16.mxu0 0
    %883 = vmatpush1.bf16.msra.mxu0 0
    %884 = vmatprep.mubr.bf16.mxu0 0
    %885 = vmatmul.mubr.bf16.gmra.mrb[0].mxu0 %v162
    %v886 = vpop.f32.mrb[0].mxu0
    %v887 = vadd.f32 0.0, %v886
    %v888 = vpop.f32.mrb[0].mxu0
    %v889 = vpop.f32.mrb[0].mxu0
    %v890 = vadd.f32 0.0, %v889
    %v891 = vpop.f32.mrb[0].mxu0
    %892 = vdwg.mxu0
    %893 = vmatprep.subr.bf16.mxu0 0
    %894 = vmatpush1.bf16.msra.mxu0 %v776
    %895 = vmatprep.subr.bf16.mxu0 0
    %896 = vmatpush1.bf16.msra.mxu0 0
    %897 = vmatprep.subr.bf16.mxu0 0
    %898 = vmatpush1.bf16.msra.mxu0 0
    %899 = vmatprep.subr.bf16.mxu0 0
    %900 = vmatpush1.bf16.msra.mxu0 0
    %901 = vmatprep.subr.bf16.mxu0 0
    %902 = vmatpush1.bf16.msra.mxu0 0
    %903 = vmatprep.subr.bf16.mxu0 0
    %904 = vmatpush1.bf16.msra.mxu0 0
    %905 = vmatprep.subr.bf16.mxu0 0
    %906 = vmatpush1.bf16.msra.mxu0 0
    %907 = vmatprep.subr.bf16.mxu0 0
    %908 = vmatpush1.bf16.msra.mxu0 0
    %909 = vmatprep.subr.bf16.mxu0 0
    %910 = vmatpush1.bf16.msra.mxu0 0
    %911 = vmatprep.subr.bf16.mxu0 0
    %912 = vmatpush1.bf16.msra.mxu0 0
    %913 = vmatprep.subr.bf16.mxu0 0
    %914 = vmatpush1.bf16.msra.mxu0 0
    %915 = vmatprep.subr.bf16.mxu0 0
    %916 = vmatpush1.bf16.msra.mxu0 0
    %917 = vmatprep.subr.bf16.mxu0 0
    %918 = vmatpush1.bf16.msra.mxu0 0
    %919 = vmatprep.subr.bf16.mxu0 0
    %920 = vmatpush1.bf16.msra.mxu0 0
    %921 = vmatprep.subr.bf16.mxu0 0
    %922 = vmatpush1.bf16.msra.mxu0 0
    %923 = vmatprep.subr.bf16.mxu0 0
    %924 = vmatpush1.bf16.msra.mxu0 0
    %925 = vmatprep.mubr.bf16.mxu0 0
    %926 = vmatmul.mubr.bf16.gmra.mrb[0].mxu0 %v244
    %v927 = vpop.f32.mrb[0].mxu0
    %v928 = vadd.f32 0.0, %v927
    %v929 = vpop.f32.mrb[0].mxu0
    %v930 = vpop.f32.mrb[0].mxu0
    %v931 = vadd.f32 0.0, %v930
    %v932 = vpop.f32.mrb[0].mxu0
    %933 = vdwg.mxu0
    %v934 = vpack.c.bf16 %v890, %v887
    %v935 = vpack.c.bf16 %v931, %v928
    %v936 = vld [vmem:[#allocation2 + $0x60] sm:$0xf]
    %v937 = vld [vmem:[#allocation2 + $0x64] sm:$0xf]
    %v938 = vld [vmem:[#allocation2 + $0x68] sm:$0xf]
    %v939 = vld [vmem:[#allocation2 + $0x6c] sm:$0xf]
    %v944 = vunpack.c.l.b16 %v936
    %v945 = vunpack.c.l.b16 %v937
    %v946 = vunpack.c.l.b16 %v938
    %v947 = vunpack.c.l.b16 %v939
    %v948 = vpack.c.b16 %v945, %v944
    %v949 = vpack.c.b16 %v947, %v946
    %v953 = vsel %vm82, %v934, 0
    %v956 = vsel %vm82, %v935, 0
    %958 = vmatprep.subr.bf16.mxu0 0
    %959 = vmatpush1.bf16.msra.mxu0 %v948
    %960 = vmatprep.subr.bf16.mxu0 0
    %961 = vmatpush1.bf16.msra.mxu0 %v949
    %962 = vmatprep.subr.bf16.mxu0 0
    %963 = vmatpush1.bf16.msra.mxu0 0
    %964 = vmatprep.subr.bf16.mxu0 0
    %965 = vmatpush1.bf16.msra.mxu0 0
    %966 = vmatprep.subr.bf16.mxu0 0
    %967 = vmatpush1.bf16.msra.mxu0 0
    %968 = vmatprep.subr.bf16.mxu0 0
    %969 = vmatpush1.bf16.msra.mxu0 0
    %970 = vmatprep.subr.bf16.mxu0 0
    %971 = vmatpush1.bf16.msra.mxu0 0
    %972 = vmatprep.subr.bf16.mxu0 0
    %973 = vmatpush1.bf16.msra.mxu0 0
    %974 = vmatprep.subr.bf16.mxu0 0
    %975 = vmatpush1.bf16.msra.mxu0 0
    %976 = vmatprep.subr.bf16.mxu0 0
    %977 = vmatpush1.bf16.msra.mxu0 0
    %978 = vmatprep.subr.bf16.mxu0 0
    %979 = vmatpush1.bf16.msra.mxu0 0
    %980 = vmatprep.subr.bf16.mxu0 0
    %981 = vmatpush1.bf16.msra.mxu0 0
    %982 = vmatprep.subr.bf16.mxu0 0
    %983 = vmatpush1.bf16.msra.mxu0 0
    %984 = vmatprep.subr.bf16.mxu0 0
    %985 = vmatpush1.bf16.msra.mxu0 0
    %986 = vmatprep.subr.bf16.mxu0 0
    %987 = vmatpush1.bf16.msra.mxu0 0
    %988 = vmatprep.subr.bf16.mxu0 0
    %989 = vmatpush1.bf16.msra.mxu0 0
    %990 = vmatprep.mubr.bf16.mxu0 0
    %991 = vmatmul.mubr.bf16.gmra.mrb[0].mxu0 %v953
    %v992 = vpop.f32.mrb[0].mxu0
    %v993 = vadd.f32 0.0, %v992
    %v994 = vpop.f32.mrb[0].mxu0
    %v995 = vpop.f32.mrb[0].mxu0
    %v996 = vadd.f32 0.0, %v995
    %v997 = vpop.f32.mrb[0].mxu0
    %998 = vmatprep.mubr.bf16.mxu0 0
    %999 = vmatmul.mubr.bf16.gmra.mrb[0].mxu0 %v956
    %v1000 = vpop.f32.mrb[0].mxu0
    %v1001 = vadd.f32 0.0, %v1000
    %v1002 = vpop.f32.mrb[0].mxu0
    %v1003 = vpop.f32.mrb[0].mxu0
    %v1004 = vadd.f32 0.0, %v1003
    %v1005 = vpop.f32.mrb[0].mxu0
    %1006 = vdwg.mxu0
    %v1007 = vadd.f32 %v848, %v993
    %v1008 = vadd.f32 %v849, %v996
    %v1009 = vadd.f32 %v850, %v1001
    %v1010 = vadd.f32 %v851, %v1004
    %1011 = vst [vmem:[#allocation5] sm:$0xff] %v1007
    %1012 = vst [vmem:[#allocation5 + $0x8] sm:$0xff] %v1008
    %1013 = vst [vmem:[#allocation5 + $0x10] sm:$0xff] %v1009
    %1014 = vst [vmem:[#allocation5 + $0x18] sm:$0xff] %v1010
    // Predicated region
    $region22: #{tpu_custom_call.1} parent=1 // pred_check
      _
    $region23: #{tpu_custom_call.1} parent=1 // pred_check_branch
      %1016 = sbr.rel (0) target = $region25
    $region24: #{tpu_custom_call.1} parent=1 // pred_region
      %s1018 = ssub.s32 512, 512
      %1019 = vsyncadd [#allocation4], %s1018
      %s1020 = sshll.u32 [#allocation5], 4
      %s1021 = int_to_ptr.vmem [resolvable:$true] %s1020
      %1026 = dma.vmem_to_hbm [thread:$0]  %s1021, 512, %s4, [#allocation4], 128, 128, 8
    $region25: #{tpu_custom_call.1} parent=1 // pred_fallthru
      _
    // Predicated region
    $region26: #{tpu_custom_call.1} parent=1 // pred_check
      _
    $region27: #{tpu_custom_call.1} parent=1 // pred_check_branch
      %1028 = sbr.rel (0) target = $region29
    $region28: #{tpu_custom_call.1} parent=1 // pred_region
      %1029 = dma.done [#allocation4], 512
    $region29: #{tpu_custom_call.1} parent=1 // pred_fallthru
      _
    %1030 = vsyncpa [#allocation3], 1
    %1031 = vsyncpa [#allocation4], 1

// kernel: tpu_custom_call.1
$region0: #{tpu_custom_call.1}
  #allocation0 [shape = 'u32[]', space=smem, size = 0x4, offset = 0x4, fixed_abs, tag = 'smem constant byte address 0x4 - core index']
  #allocation1 [shape = 'u32[144,128]{1,0:T(1,128)}', space=vmem, size = 0x12000, scoped, tag = 'internal scratch']
  %s0 = inlined_call_operand.vmem [shape: bf16[2,16,32], index: 0, kind: input, shape index: {}]
  %s1 = inlined_call_operand.vmem [shape: bf16[2,48,16], index: 1, kind: input, shape index: {}]
  %s2 = inlined_call_operand.hbm [shape: bf16[224,128], index: 2, kind: input, shape index: {}]
  %s3 = inlined_call_operand.vmem [shape: f32[1,128], index: 3, kind: input, shape index: {}]
  %s4 = inlined_call_operand.hbm [shape: f32[2,16,128], index: 4, kind: output, shape index: {}]
  %s5 = sld [smem:[#allocation0]]
  $region30: #{tpu_custom_call.1} parent=0
    _
  %s7 = ssub.s32 1, %s5
  %s8 = scalar_select 0, %s7, %s5
  $region1: #{tpu_custom_call.1} parent=0
    #allocation2 [shape = 'u8[57344]{0}', space=vmem, size = 0xe000, scoped, tag = 'input window, operand 2, single buffered']
    #allocation3 [shape = 's32[1]{0}', space=sflag, size = 0x4, scoped, tag = 'scoped memory for tpu_custom_call.1']
    #allocation4 [shape = 's32[1]{0}', space=sflag, size = 0x4, scoped, tag = 'scoped memory for tpu_custom_call.1']
    #allocation5 [shape = 'u8[16384]{0}', space=vmem, size = 0x4000, scoped, tag = 'output window, operand 0, single buffered']
    %9 = vsyncpa [#allocation3], 0
    %10 = vsyncpa [#allocation4], 0
    // Predicated region
    $region2: #{tpu_custom_call.1} parent=1 // pred_check
      _
    $region3: #{tpu_custom_call.1} parent=1 // pred_check_branch
      %12 = sbr.rel (0) target = $region5
    $region4: #{tpu_custom_call.1} parent=1 // pred_region
      _
    $region5: #{tpu_custom_call.1} parent=1 // pred_fallthru
      _
    // Predicated region
    $region6: #{tpu_custom_call.1} parent=1 // pred_check
      _
    $region7: #{tpu_custom_call.1} parent=1 // pred_check_branch
      %14 = sbr.rel (0) target = $region9
    $region8: #{tpu_custom_call.1} parent=1 // pred_region
      _
    $region9: #{tpu_custom_call.1} parent=1 // pred_fallthru
      _
    // Predicated region
    $region10: #{tpu_custom_call.1} parent=1 // pred_check
      _
    $region11: #{tpu_custom_call.1} parent=1 // pred_check_branch
      %16 = sbr.rel (0) target = $region13
    $region12: #{tpu_custom_call.1} parent=1 // pred_region
      %s18 = ssub.s32 1792, 1792
      %19 = vsyncadd [#allocation3], %s18
      %s20 = sshll.u32 [#allocation2], 4
      %s21 = int_to_ptr.vmem [resolvable:$true] %s20
      %26 = dma.hbm_to_vmem [thread:$0]  %s2, 1792, %s21, [#allocation3], 64, 64, 4
    $region13: #{tpu_custom_call.1} parent=1 // pred_fallthru
      _
    // Predicated region
    $region14: #{tpu_custom_call.1} parent=1 // pred_check
      _
    $region15: #{tpu_custom_call.1} parent=1 // pred_check_branch
      %28 = sbr.rel (0) target = $region17
    $region16: #{tpu_custom_call.1} parent=1 // pred_region
      _
    $region17: #{tpu_custom_call.1} parent=1 // pred_fallthru
      _
    // Predicated region
    $region18: #{tpu_custom_call.1} parent=1 // pred_check
      _
    $region19: #{tpu_custom_call.1} parent=1 // pred_check_branch
      %30 = sbr.rel (0) target = $region21
    $region20: #{tpu_custom_call.1} parent=1 // pred_region
      %31 = dma.done [#allocation3], 1792
    $region21: #{tpu_custom_call.1} parent=1 // pred_fallthru
      _
    %v33 = vld [vmem:[%s0] sm:$0xf]
    %v34 = vld [vmem:[%s0 + $0x4] sm:$0xf]
    %v35 = vld [vmem:[%s0 + $0x8] sm:$0xf]
    %v36 = vld [vmem:[%s0 + $0xc] sm:$0xf]
    %v37 = vld [vmem:[%s1] sm:$0xf]
    %v38 = vld [vmem:[%s1 + $0x4] sm:$0xf]
    %v39 = vld [vmem:[%s1 + $0x8] sm:$0xf]
    %v40 = vld [vmem:[%s1 + $0xc] sm:$0xf]
    %v41 = vld [vmem:[%s1 + $0x10] sm:$0xf]
    %v42 = vld [vmem:[%s1 + $0x14] sm:$0xf]
    %v43 = vld [vmem:[%s1 + $0x18] sm:$0xf]
    %v44 = vld [vmem:[%s1 + $0x1c] sm:$0xf]
    %v45 = vld [vmem:[%s1 + $0x20] sm:$0xf]
    %v46 = vld [vmem:[%s1 + $0x24] sm:$0xf]
    %v47 = vld [vmem:[%s1 + $0x28] sm:$0xf]
    %v48 = vld [vmem:[%s1 + $0x2c] sm:$0xf]
    %v49 = vld [vmem:[#allocation2] sm:$0xf]
    %v50 = vld [vmem:[#allocation2 + $0x4] sm:$0xf]
    %v51 = vld [vmem:[#allocation2 + $0x8] sm:$0xf]
    %v52 = vld [vmem:[#allocation2 + $0xc] sm:$0xf]
    %v53 = vld [vmem:[%s3] sm:$0x1]
    %v55 = vlaneseq
    %v56 = vshrl.u32 %v55, 7
    %v57 = vsub.s32 0, %v56
    %v58 = vrot.slane %v53, %v57
    %v64 = vunpack.c.l.b16 %v33
    %v65 = vunpack.c.l.b16 %v34
    %v66 = vunpack.c.l.b16 %v35
    %v67 = vunpack.c.l.b16 %v36
    %v68 = vpack.c.b16 %v65, %v64
    %v69 = vpack.c.b16 %v67, %v66
    %v74 = vunpack.c.l.b16 %v49
    %v75 = vunpack.c.l.b16 %v50
    %v76 = vunpack.c.l.b16 %v51
    %v77 = vunpack.c.l.b16 %v52
    %v78 = vpack.c.b16 %v75, %v74
    %v79 = vpack.c.b16 %v77, %v76
    %vm82 = vcmask 261120
    %v84 = vsel %vm82, %v68, 0
    %v87 = vsel %vm82, %v69, 0
    %89 = vmatprep.subr.bf16.mxu0 0
    %90 = vmatpush1.bf16.msra.mxu0 %v78
    %91 = vmatprep.subr.bf16.mxu0 0
    %92 = vmatpush1.bf16.msra.mxu0 %v79
    %93 = vmatprep.subr.bf16.mxu0 0
    %94 = vmatpush1.bf16.msra.mxu0 0
    %95 = vmatprep.subr.bf16.mxu0 0
    %96 = vmatpush1.bf16.msra.mxu0 0
    %97 = vmatprep.subr.bf16.mxu0 0
    %98 = vmatpush1.bf16.msra.mxu0 0
    %99 = vmatprep.subr.bf16.mxu0 0
    %100 = vmatpush1.bf16.msra.mxu0 0
    %101 = vmatprep.subr.bf16.mxu0 0
    %102 = vmatpush1.bf16.msra.mxu0 0
    %103 = vmatprep.subr.bf16.mxu0 0
    %104 = vmatpush1.bf16.msra.mxu0 0
    %105 = vmatprep.subr.bf16.mxu0 0
    %106 = vmatpush1.bf16.msra.mxu0 0
    %107 = vmatprep.subr.bf16.mxu0 0
    %108 = vmatpush1.bf16.msra.mxu0 0
    %109 = vmatprep.subr.bf16.mxu0 0
    %110 = vmatpush1.bf16.msra.mxu0 0
    %111 = vmatprep.subr.bf16.mxu0 0
    %112 = vmatpush1.bf16.msra.mxu0 0
    %113 = vmatprep.subr.bf16.mxu0 0
    %114 = vmatpush1.bf16.msra.mxu0 0
    %115 = vmatprep.subr.bf16.mxu0 0
    %116 = vmatpush1.bf16.msra.mxu0 0
    %117 = vmatprep.subr.bf16.mxu0 0
    %118 = vmatpush1.bf16.msra.mxu0 0
    %119 = vmatprep.subr.bf16.mxu0 0
    %120 = vmatpush1.bf16.msra.mxu0 0
    %121 = vmatprep.mubr.bf16.mxu0 0
    %122 = vmatmul.mubr.bf16.gmra.mrb[0].mxu0 %v84
    %v123 = vpop.f32.mrb[0].mxu0
    %v124 = vadd.f32 %v58, %v123
    %v125 = vpop.f32.mrb[0].mxu0
    %v126 = vpop.f32.mrb[0].mxu0
    %v127 = vadd.f32 %v58, %v126
    %v128 = vpop.f32.mrb[0].mxu0
    %129 = vmatprep.mubr.bf16.mxu0 0
    %130 = vmatmul.mubr.bf16.gmra.mrb[0].mxu0 %v87
    %v131 = vpop.f32.mrb[0].mxu0
    %v132 = vadd.f32 %v58, %v131
    %v133 = vpop.f32.mrb[0].mxu0
    %v134 = vpop.f32.mrb[0].mxu0
    %v135 = vadd.f32 %v58, %v134
    %v136 = vpop.f32.mrb[0].mxu0
    %137 = vdwg.mxu0
    %v144 = vunpack.c.l.b16 %v37
    %v145 = vunpack.c.l.b16 %v38
    %v146 = vunpack.c.l.b16 %v39
    %v147 = vunpack.c.l.b16 %v40
    %v148 = vunpack.c.l.b16 %v41
    %v149 = vunpack.c.l.b16 %v42
    %v150 = vpack.c.b16 %v145, %v144
    %v151 = vpack.c.b16 %v147, %v146
    %v152 = vpack.c.b16 %v149, %v148
    %vm154 = vcmask 130048
    %v156 = vsel %vm154, %v150, 0
    %v159 = vsel %vm154, %v151, 0
    %v162 = vsel %vm154, %v152, 0
    %164 = vmatprep.subr.bf16.mxu0 0
    %165 = vmatpush1.bf16.msra.mxu0 %v68
    %166 = vmatprep.subr.bf16.mxu0 0
    %167 = vmatpush1.bf16.msra.mxu0 0
    %168 = vmatprep.subr.bf16.mxu0 0
    %169 = vmatpush1.bf16.msra.mxu0 0
    %170 = vmatprep.subr.bf16.mxu0 0
    %171 = vmatpush1.bf16.msra.mxu0 0
    %172 = vmatprep.subr.bf16.mxu0 0
    %173 = vmatpush1.bf16.msra.mxu0 0
    %174 = vmatprep.subr.bf16.mxu0 0
    %175 = vmatpush1.bf16.msra.mxu0 0
    %176 = vmatprep.subr.bf16.mxu0 0
    %177 = vmatpush1.bf16.msra.mxu0 0
    %178 = vmatprep.subr.bf16.mxu0 0
    %179 = vmatpush1.bf16.msra.mxu0 0
    %180 = vmatprep.subr.bf16.mxu0 0
    %181 = vmatpush1.bf16.msra.mxu0 0
    %182 = vmatprep.subr.bf16.mxu0 0
    %183 = vmatpush1.bf16.msra.mxu0 0
    %184 = vmatprep.subr.bf16.mxu0 0
    %185 = vmatpush1.bf16.msra.mxu0 0
    %186 = vmatprep.subr.bf16.mxu0 0
    %187 = vmatpush1.bf16.msra.mxu0 0
    %188 = vmatprep.subr.bf16.mxu0 0
    %189 = vmatpush1.bf16.msra.mxu0 0
    %190 = vmatprep.subr.bf16.mxu0 0
    %191 = vmatpush1.bf16.msra.mxu0 0
    %192 = vmatprep.subr.bf16.mxu0 0
    %193 = vmatpush1.bf16.msra.mxu0 0
    %194 = vmatprep.subr.bf16.mxu0 0
    %195 = vmatpush1.bf16.msra.mxu0 0
    %196 = vmatprep.mubr.bf16.mxu0 0
    %197 = vmatmul.mubr.bf16.gmra.mrb[0].mxu0 %v156
    %v198 = vpop.f32.mrb[0].mxu0
    %v199 = vadd.f32 0.0, %v198
    %v200 = vpop.f32.mrb[0].mxu0
    %v201 = vpop.f32.mrb[0].mxu0
    %v202 = vadd.f32 0.0, %v201
    %v203 = vpop.f32.mrb[0].mxu0
    %204 = vmatprep.mubr.bf16.mxu0 0
    %205 = vmatmul.mubr.bf16.gmra.mrb[0].mxu0 %v159
    %v206 = vpop.f32.mrb[0].mxu0
    %v207 = vadd.f32 0.0, %v206
    %v208 = vpop.f32.mrb[0].mxu0
    %v209 = vpop.f32.mrb[0].mxu0
    %v210 = vadd.f32 0.0, %v209
    %v211 = vpop.f32.mrb[0].mxu0
    %212 = vmatprep.mubr.bf16.mxu0 0
    %213 = vmatmul.mubr.bf16.gmra.mrb[0].mxu0 %v162
    %v214 = vpop.f32.mrb[0].mxu0
    %v215 = vadd.f32 0.0, %v214
    %v216 = vpop.f32.mrb[0].mxu0
    %v217 = vpop.f32.mrb[0].mxu0
    %v218 = vadd.f32 0.0, %v217
    %v219 = vpop.f32.mrb[0].mxu0
    %220 = vdwg.mxu0
    %v227 = vunpack.c.l.b16 %v43
    %v228 = vunpack.c.l.b16 %v44
    %v229 = vunpack.c.l.b16 %v45
    %v230 = vunpack.c.l.b16 %v46
    %v231 = vunpack.c.l.b16 %v47
    %v232 = vunpack.c.l.b16 %v48
    %v233 = vpack.c.b16 %v228, %v227
    %v234 = vpack.c.b16 %v230, %v229
    %v235 = vpack.c.b16 %v232, %v231
    %v238 = vsel %vm154, %v233, 0
    %v241 = vsel %vm154, %v234, 0
    %v244 = vsel %vm154, %v235, 0
    %246 = vmatprep.subr.bf16.mxu0 0
    %247 = vmatpush1.bf16.msra.mxu0 %v69
    %248 = vmatprep.subr.bf16.mxu0 0
    %249 = vmatpush1.bf16.msra.mxu0 0
    %250 = vmatprep.subr.bf16.mxu0 0
    %251 = vmatpush1.bf16.msra.mxu0 0
    %252 = vmatprep.subr.bf16.mxu0 0
    %253 = vmatpush1.bf16.msra.mxu0 0
    %254 = vmatprep.subr.bf16.mxu0 0
    %255 = vmatpush1.bf16.msra.mxu0 0
    %256 = vmatprep.subr.bf16.mxu0 0
    %257 = vmatpush1.bf16.msra.mxu0 0
    %258 = vmatprep.subr.bf16.mxu0 0
    %259 = vmatpush1.bf16.msra.mxu0 0
    %260 = vmatprep.subr.bf16.mxu0 0
    %261 = vmatpush1.bf16.msra.mxu0 0
    %262 = vmatprep.subr.bf16.mxu0 0
    %263 = vmatpush1.bf16.msra.mxu0 0
    %264 = vmatprep.subr.bf16.mxu0 0
    %265 = vmatpush1.bf16.msra.mxu0 0
    %266 = vmatprep.subr.bf16.mxu0 0
    %267 = vmatpush1.bf16.msra.mxu0 0
    %268 = vmatprep.subr.bf16.mxu0 0
    %269 = vmatpush1.bf16.msra.mxu0 0
    %270 = vmatprep.subr.bf16.mxu0 0
    %271 = vmatpush1.bf16.msra.mxu0 0
    %272 = vmatprep.subr.bf16.mxu0 0
    %273 = vmatpush1.bf16.msra.mxu0 0
    %274 = vmatprep.subr.bf16.mxu0 0
    %275 = vmatpush1.bf16.msra.mxu0 0
    %276 = vmatprep.subr.bf16.mxu0 0
    %277 = vmatpush1.bf16.msra.mxu0 0
    %278 = vmatprep.mubr.bf16.mxu0 0
    %279 = vmatmul.mubr.bf16.gmra.mrb[0].mxu0 %v238
    %v280 = vpop.f32.mrb[0].mxu0
    %v281 = vadd.f32 0.0, %v280
    %v282 = vpop.f32.mrb[0].mxu0
    %v283 = vpop.f32.mrb[0].mxu0
    %v284 = vadd.f32 0.0, %v283
    %v285 = vpop.f32.mrb[0].mxu0
    %286 = vmatprep.mubr.bf16.mxu0 0
    %287 = vmatmul.mubr.bf16.gmra.mrb[0].mxu0 %v241
    %v288 = vpop.f32.mrb[0].mxu0
    %v289 = vadd.f32 0.0, %v288
    %v290 = vpop.f32.mrb[0].mxu0
    %v291 = vpop.f32.mrb[0].mxu0
    %v292 = vadd.f32 0.0, %v291
    %v293 = vpop.f32.mrb[0].mxu0
    %294 = vmatprep.mubr.bf16.mxu0 0
    %295 = vmatmul.mubr.bf16.gmra.mrb[0].mxu0 %v244
    %v296 = vpop.f32.mrb[0].mxu0
    %v297 = vadd.f32 0.0, %v296
    %v298 = vpop.f32.mrb[0].mxu0
    %v299 = vpop.f32.mrb[0].mxu0
    %v300 = vadd.f32 0.0, %v299
    %v301 = vpop.f32.mrb[0].mxu0
    %302 = vdwg.mxu0
    %v303 = vpack.c.bf16 %v202, %v199
    %v304 = vpack.c.bf16 %v284, %v281
    %v305 = vld [vmem:[#allocation2 + $0x10] sm:$0xf]
    %v306 = vld [vmem:[#allocation2 + $0x14] sm:$0xf]
    %v307 = vld [vmem:[#allocation2 + $0x18] sm:$0xf]
    %v308 = vld [vmem:[#allocation2 + $0x1c] sm:$0xf]
    %v313 = vunpack.c.l.b16 %v305
    %v314 = vunpack.c.l.b16 %v306
    %v315 = vunpack.c.l.b16 %v307
    %v316 = vunpack.c.l.b16 %v308
    %v317 = vpack.c.b16 %v314, %v313
    %v318 = vpack.c.b16 %v316, %v315
    %v322 = vsel %vm82, %v303, 0
    %v325 = vsel %vm82, %v304, 0
    %327 = vmatprep.subr.bf16.mxu0 0
    %328 = vmatpush1.bf16.msra.mxu0 %v317
    %329 = vmatprep.subr.bf16.mxu0 0
    %330 = vmatpush1.bf16.msra.mxu0 %v318
    %331 = vmatprep.subr.bf16.mxu0 0
    %332 = vmatpush1.bf16.msra.mxu0 0
    %333 = vmatprep.subr.bf16.mxu0 0
    %334 = vmatpush1.bf16.msra.mxu0 0
    %335 = vmatprep.subr.bf16.mxu0 0
    %336 = vmatpush1.bf16.msra.mxu0 0
    %337 = vmatprep.subr.bf16.mxu0 0
    %338 = vmatpush1.bf16.msra.mxu0 0
    %339 = vmatprep.subr.bf16.mxu0 0
    %340 = vmatpush1.bf16.msra.mxu0 0
    %341 = vmatprep.subr.bf16.mxu0 0
    %342 = vmatpush1.bf16.msra.mxu0 0
    %343 = vmatprep.subr.bf16.mxu0 0
    %344 = vmatpush1.bf16.msra.mxu0 0
    %345 = vmatprep.subr.bf16.mxu0 0
    %346 = vmatpush1.bf16.msra.mxu0 0
    %347 = vmatprep.subr.bf16.mxu0 0
    %348 = vmatpush1.bf16.msra.mxu0 0
    %349 = vmatprep.subr.bf16.mxu0 0
    %350 = vmatpush1.bf16.msra.mxu0 0
    %351 = vmatprep.subr.bf16.mxu0 0
    %352 = vmatpush1.bf16.msra.mxu0 0
    %353 = vmatprep.subr.bf16.mxu0 0
    %354 = vmatpush1.bf16.msra.mxu0 0
    %355 = vmatprep.subr.bf16.mxu0 0
    %356 = vmatpush1.bf16.msra.mxu0 0
    %357 = vmatprep.subr.bf16.mxu0 0
    %358 = vmatpush1.bf16.msra.mxu0 0
    %359 = vmatprep.mubr.bf16.mxu0 0
    %360 = vmatmul.mubr.bf16.gmra.mrb[0].mxu0 %v322
    %v361 = vpop.f32.mrb[0].mxu0
    %v362 = vadd.f32 0.0, %v361
    %v363 = vpop.f32.mrb[0].mxu0
    %v364 = vpop.f32.mrb[0].mxu0
    %v365 = vadd.f32 0.0, %v364
    %v366 = vpop.f32.mrb[0].mxu0
    %367 = vmatprep.mubr.bf16.mxu0 0
    %368 = vmatmul.mubr.bf16.gmra.mrb[0].mxu0 %v325
    %v369 = vpop.f32.mrb[0].mxu0
    %v370 = vadd.f32 0.0, %v369
    %v371 = vpop.f32.mrb[0].mxu0
    %v372 = vpop.f32.mrb[0].mxu0
    %v373 = vadd.f32 0.0, %v372
    %v374 = vpop.f32.mrb[0].mxu0
    %375 = vdwg.mxu0
    %v376 = vadd.f32 %v124, %v362
    %v377 = vadd.f32 %v127, %v365
    %v378 = vadd.f32 %v132, %v370
    %v379 = vadd.f32 %v135, %v373
    %380 = vmatprep.subr.bf16.mxu0 0
    %381 = vmatpush1.bf16.msra.mxu0 %v303
    %382 = vmatprep.subr.bf16.mxu0 0
    %383 = vmatpush1.bf16.msra.mxu0 0
    %384 = vmatprep.subr.bf16.mxu0 0
    %385 = vmatpush1.bf16.msra.mxu0 0
    %386 = vmatprep.subr.bf16.mxu0 0
    %387 = vmatpush1.bf16.msra.mxu0 0
    %388 = vmatprep.subr.bf16.mxu0 0
    %389 = vmatpush1.bf16.msra.mxu0 0
    %390 = vmatprep.subr.bf16.mxu0 0
    %391 = vmatpush1.bf16.msra.mxu0 0
    %392 = vmatprep.subr.bf16.mxu0 0
    %393 = vmatpush1.bf16.msra.mxu0 0
    %394 = vmatprep.subr.bf16.mxu0 0
    %395 = vmatpush1.bf16.msra.mxu0 0
    %396 = vmatprep.subr.bf16.mxu0 0
    %397 = vmatpush1.bf16.msra.mxu0 0
    %398 = vmatprep.subr.bf16.mxu0 0
    %399 = vmatpush1.bf16.msra.mxu0 0
    %400 = vmatprep.subr.bf16.mxu0 0
    %401 = vmatpush1.bf16.msra.mxu0 0
    %402 = vmatprep.subr.bf16.mxu0 0
    %403 = vmatpush1.bf16.msra.mxu0 0
    %404 = vmatprep.subr.bf16.mxu0 0
    %405 = vmatpush1.bf16.msra.mxu0 0
    %406 = vmatprep.subr.bf16.mxu0 0
    %407 = vmatpush1.bf16.msra.mxu0 0
    %408 = vmatprep.subr.bf16.mxu0 0
    %409 = vmatpush1.bf16.msra.mxu0 0
    %410 = vmatprep.subr.bf16.mxu0 0
    %411 = vmatpush1.bf16.msra.mxu0 0
    %412 = vmatprep.mubr.bf16.mxu0 0
    %413 = vmatmul.mubr.bf16.gmra.mrb[0].mxu0 %v156
    %v414 = vpop.f32.mrb[0].mxu0
    %v415 = vadd.f32 0.0, %v414
    %v416 = vpop.f32.mrb[0].mxu0
    %v417 = vpop.f32.mrb[0].mxu0
    %v418 = vadd.f32 0.0, %v417
    %v419 = vpop.f32.mrb[0].mxu0
    %420 = vdwg.mxu0
    %421 = vmatprep.subr.bf16.mxu0 0
    %422 = vmatpush1.bf16.msra.mxu0 %v304
    %423 = vmatprep.subr.bf16.mxu0 0
    %424 = vmatpush1.bf16.msra.mxu0 0
    %425 = vmatprep.subr.bf16.mxu0 0
    %426 = vmatpush1.bf16.msra.mxu0 0
    %427 = vmatprep.subr.bf16.mxu0 0
    %428 = vmatpush1.bf16.msra.mxu0 0
    %429 = vmatprep.subr.bf16.mxu0 0
    %430 = vmatpush1.bf16.msra.mxu0 0
    %431 = vmatprep.subr.bf16.mxu0 0
    %432 = vmatpush1.bf16.msra.mxu0 0
    %433 = vmatprep.subr.bf16.mxu0 0
    %434 = vmatpush1.bf16.msra.mxu0 0
    %435 = vmatprep.subr.bf16.mxu0 0
    %436 = vmatpush1.bf16.msra.mxu0 0
    %437 = vmatprep.subr.bf16.mxu0 0
    %438 = vmatpush1.bf16.msra.mxu0 0
    %439 = vmatprep.subr.bf16.mxu0 0
    %440 = vmatpush1.bf16.msra.mxu0 0
    %441 = vmatprep.subr.bf16.mxu0 0
    %442 = vmatpush1.bf16.msra.mxu0 0
    %443 = vmatprep.subr.bf16.mxu0 0
    %444 = vmatpush1.bf16.msra.mxu0 0
    %445 = vmatprep.subr.bf16.mxu0 0
    %446 = vmatpush1.bf16.msra.mxu0 0
    %447 = vmatprep.subr.bf16.mxu0 0
    %448 = vmatpush1.bf16.msra.mxu0 0
    %449 = vmatprep.subr.bf16.mxu0 0
    %450 = vmatpush1.bf16.msra.mxu0 0
    %451 = vmatprep.subr.bf16.mxu0 0
    %452 = vmatpush1.bf16.msra.mxu0 0
    %453 = vmatprep.mubr.bf16.mxu0 0
    %454 = vmatmul.mubr.bf16.gmra.mrb[0].mxu0 %v238
    %v455 = vpop.f32.mrb[0].mxu0
    %v456 = vadd.f32 0.0, %v455
    %v457 = vpop.f32.mrb[0].mxu0
    %v458 = vpop.f32.mrb[0].mxu0
    %v459 = vadd.f32 0.0, %v458
    %v460 = vpop.f32.mrb[0].mxu0
    %461 = vdwg.mxu0
    %v462 = vpack.c.bf16 %v418, %v415
    %v463 = vpack.c.bf16 %v459, %v456
    %v464 = vld [vmem:[#allocation2 + $0x20] sm:$0xf]
    %v465 = vld [vmem:[#allocation2 + $0x24] sm:$0xf]
    %v466 = vld [vmem:[#allocation2 + $0x28] sm:$0xf]
    %v467 = vld [vmem:[#allocation2 + $0x2c] sm:$0xf]
    %v472 = vunpack.c.l.b16 %v464
    %v473 = vunpack.c.l.b16 %v465
    %v474 = vunpack.c.l.b16 %v466
    %v475 = vunpack.c.l.b16 %v467
    %v476 = vpack.c.b16 %v473, %v472
    %v477 = vpack.c.b16 %v475, %v474
    %v481 = vsel %vm82, %v462, 0
    %v484 = vsel %vm82, %v463, 0
    %486 = vmatprep.subr.bf16.mxu0 0
    %487 = vmatpush1.bf16.msra.mxu0 %v476
    %488 = vmatprep.subr.bf16.mxu0 0
    %489 = vmatpush1.bf16.msra.mxu0 %v477
    %490 = vmatprep.subr.bf16.mxu0 0
    %491 = vmatpush1.bf16.msra.mxu0 0
    %492 = vmatprep.subr.bf16.mxu0 0
    %493 = vmatpush1.bf16.msra.mxu0 0
    %494 = vmatprep.subr.bf16.mxu0 0
    %495 = vmatpush1.bf16.msra.mxu0 0
    %496 = vmatprep.subr.bf16.mxu0 0
    %497 = vmatpush1.bf16.msra.mxu0 0
    %498 = vmatprep.subr.bf16.mxu0 0
    %499 = vmatpush1.bf16.msra.mxu0 0
    %500 = vmatprep.subr.bf16.mxu0 0
    %501 = vmatpush1.bf16.msra.mxu0 0
    %502 = vmatprep.subr.bf16.mxu0 0
    %503 = vmatpush1.bf16.msra.mxu0 0
    %504 = vmatprep.subr.bf16.mxu0 0
    %505 = vmatpush1.bf16.msra.mxu0 0
    %506 = vmatprep.subr.bf16.mxu0 0
    %507 = vmatpush1.bf16.msra.mxu0 0
    %508 = vmatprep.subr.bf16.mxu0 0
    %509 = vmatpush1.bf16.msra.mxu0 0
    %510 = vmatprep.subr.bf16.mxu0 0
    %511 = vmatpush1.bf16.msra.mxu0 0
    %512 = vmatprep.subr.bf16.mxu0 0
    %513 = vmatpush1.bf16.msra.mxu0 0
    %514 = vmatprep.subr.bf16.mxu0 0
    %515 = vmatpush1.bf16.msra.mxu0 0
    %516 = vmatprep.subr.bf16.mxu0 0
    %517 = vmatpush1.bf16.msra.mxu0 0
    %518 = vmatprep.mubr.bf16.mxu0 0
    %519 = vmatmul.mubr.bf16.gmra.mrb[0].mxu0 %v481
    %v520 = vpop.f32.mrb[0].mxu0
    %v521 = vadd.f32 0.0, %v520
    %v522 = vpop.f32.mrb[0].mxu0
    %v523 = vpop.f32.mrb[0].mxu0
    %v524 = vadd.f32 0.0, %v523
    %v525 = vpop.f32.mrb[0].mxu0
    %526 = vmatprep.mubr.bf16.mxu0 0
    %527 = vmatmul.mubr.bf16.gmra.mrb[0].mxu0 %v484
    %v528 = vpop.f32.mrb[0].mxu0
    %v529 = vadd.f32 0.0, %v528
    %v530 = vpop.f32.mrb[0].mxu0
    %v531 = vpop.f32.mrb[0].mxu0
    %v532 = vadd.f32 0.0, %v531
    %v533 = vpop.f32.mrb[0].mxu0
    %534 = vdwg.mxu0
    %v535 = vadd.f32 %v376, %v521
    %v536 = vadd.f32 %v377, %v524
    %v537 = vadd.f32 %v378, %v529
    %v538 = vadd.f32 %v379, %v532
    %v539 = vpack.c.bf16 %v210, %v207
    %v540 = vpack.c.bf16 %v292, %v289
    %v541 = vld [vmem:[#allocation2 + $0x30] sm:$0xf]
    %v542 = vld [vmem:[#allocation2 + $0x34] sm:$0xf]
    %v543 = vld [vmem:[#allocation2 + $0x38] sm:$0xf]
    %v544 = vld [vmem:[#allocation2 + $0x3c] sm:$0xf]
    %v549 = vunpack.c.l.b16 %v541
    %v550 = vunpack.c.l.b16 %v542
    %v551 = vunpack.c.l.b16 %v543
    %v552 = vunpack.c.l.b16 %v544
    %v553 = vpack.c.b16 %v550, %v549
    %v554 = vpack.c.b16 %v552, %v551
    %v558 = vsel %vm82, %v539, 0
    %v561 = vsel %vm82, %v540, 0
    %563 = vmatprep.subr.bf16.mxu0 0
    %564 = vmatpush1.bf16.msra.mxu0 %v553
    %565 = vmatprep.subr.bf16.mxu0 0
    %566 = vmatpush1.bf16.msra.mxu0 %v554
    %567 = vmatprep.subr.bf16.mxu0 0
    %568 = vmatpush1.bf16.msra.mxu0 0
    %569 = vmatprep.subr.bf16.mxu0 0
    %570 = vmatpush1.bf16.msra.mxu0 0
    %571 = vmatprep.subr.bf16.mxu0 0
    %572 = vmatpush1.bf16.msra.mxu0 0
    %573 = vmatprep.subr.bf16.mxu0 0
    %574 = vmatpush1.bf16.msra.mxu0 0
    %575 = vmatprep.subr.bf16.mxu0 0
    %576 = vmatpush1.bf16.msra.mxu0 0
    %577 = vmatprep.subr.bf16.mxu0 0
    %578 = vmatpush1.bf16.msra.mxu0 0
    %579 = vmatprep.subr.bf16.mxu0 0
    %580 = vmatpush1.bf16.msra.mxu0 0
    %581 = vmatprep.subr.bf16.mxu0 0
    %582 = vmatpush1.bf16.msra.mxu0 0
    %583 = vmatprep.subr.bf16.mxu0 0
    %584 = vmatpush1.bf16.msra.mxu0 0
    %585 = vmatprep.subr.bf16.mxu0 0
    %586 = vmatpush1.bf16.msra.mxu0 0
    %587 = vmatprep.subr.bf16.mxu0 0
    %588 = vmatpush1.bf16.msra.mxu0 0
    %589 = vmatprep.subr.bf16.mxu0 0
    %590 = vmatpush1.bf16.msra.mxu0 0
    %591 = vmatprep.subr.bf16.mxu0 0
    %592 = vmatpush1.bf16.msra.mxu0 0
    %593 = vmatprep.subr.bf16.mxu0 0
    %594 = vmatpush1.bf16.msra.mxu0 0
    %595 = vmatprep.mubr.bf16.mxu0 0
    %596 = vmatmul.mubr.bf16.gmra.mrb[0].mxu0 %v558
    %v597 = vpop.f32.mrb[0].mxu0
    %v598 = vadd.f32 0.0, %v597
    %v599 = vpop.f32.mrb[0].mxu0
    %v600 = vpop.f32.mrb[0].mxu0
    %v601 = vadd.f32 0.0, %v600
    %v602 = vpop.f32.mrb[0].mxu0
    %603 = vmatprep.mubr.bf16.mxu0 0
    %604 = vmatmul.mubr.bf16.gmra.mrb[0].mxu0 %v561
    %v605 = vpop.f32.mrb[0].mxu0
    %v606 = vadd.f32 0.0, %v605
    %v607 = vpop.f32.mrb[0].mxu0
    %v608 = vpop.f32.mrb[0].mxu0
    %v609 = vadd.f32 0.0, %v608
    %v610 = vpop.f32.mrb[0].mxu0
    %611 = vdwg.mxu0
    %v612 = vadd.f32 %v535, %v598
    %v613 = vadd.f32 %v536, %v601
    %v614 = vadd.f32 %v537, %v606
    %v615 = vadd.f32 %v538, %v609
    %616 = vmatprep.subr.bf16.mxu0 0
    %617 = vmatpush1.bf16.msra.mxu0 %v539
    %618 = vmatprep.subr.bf16.mxu0 0
    %619 = vmatpush1.bf16.msra.mxu0 0
    %620 = vmatprep.subr.bf16.mxu0 0
    %621 = vmatpush1.bf16.msra.mxu0 0
    %622 = vmatprep.subr.bf16.mxu0 0
    %623 = vmatpush1.bf16.msra.mxu0 0
    %624 = vmatprep.subr.bf16.mxu0 0
    %625 = vmatpush1.bf16.msra.mxu0 0
    %626 = vmatprep.subr.bf16.mxu0 0
    %627 = vmatpush1.bf16.msra.mxu0 0
    %628 = vmatprep.subr.bf16.mxu0 0
    %629 = vmatpush1.bf16.msra.mxu0 0
    %630 = vmatprep.subr.bf16.mxu0 0
    %631 = vmatpush1.bf16.msra.mxu0 0
    %632 = vmatprep.subr.bf16.mxu0 0
    %633 = vmatpush1.bf16.msra.mxu0 0
    %634 = vmatprep.subr.bf16.mxu0 0
    %635 = vmatpush1.bf16.msra.mxu0 0
    %636 = vmatprep.subr.bf16.mxu0 0
    %637 = vmatpush1.bf16.msra.mxu0 0
    %638 = vmatprep.subr.bf16.mxu0 0
    %639 = vmatpush1.bf16.msra.mxu0 0
    %640 = vmatprep.subr.bf16.mxu0 0
    %641 = vmatpush1.bf16.msra.mxu0 0
    %642 = vmatprep.subr.bf16.mxu0 0
    %643 = vmatpush1.bf16.msra.mxu0 0
    %644 = vmatprep.subr.bf16.mxu0 0
    %645 = vmatpush1.bf16.msra.mxu0 0
    %646 = vmatprep.subr.bf16.mxu0 0
    %647 = vmatpush1.bf16.msra.mxu0 0
    %648 = vmatprep.mubr.bf16.mxu0 0
    %649 = vmatmul.mubr.bf16.gmra.mrb[0].mxu0 %v159
    %v650 = vpop.f32.mrb[0].mxu0
    %v651 = vadd.f32 0.0, %v650
    %v652 = vpop.f32.mrb[0].mxu0
    %v653 = vpop.f32.mrb[0].mxu0
    %v654 = vadd.f32 0.0, %v653
    %v655 = vpop.f32.mrb[0].mxu0
    %656 = vdwg.mxu0
    %657 = vmatprep.subr.bf16.mxu0 0
    %658 = vmatpush1.bf16.msra.mxu0 %v540
    %659 = vmatprep.subr.bf16.mxu0 0
    %660 = vmatpush1.bf16.msra.mxu0 0
    %661 = vmatprep.subr.bf16.mxu0 0
    %662 = vmatpush1.bf16.msra.mxu0 0
    %663 = vmatprep.subr.bf16.mxu0 0
    %664 = vmatpush1.bf16.msra.mxu0 0
    %665 = vmatprep.subr.bf16.mxu0 0
    %666 = vmatpush1.bf16.msra.mxu0 0
    %667 = vmatprep.subr.bf16.mxu0 0
    %668 = vmatpush1.bf16.msra.mxu0 0
    %669 = vmatprep.subr.bf16.mxu0 0
    %670 = vmatpush1.bf16.msra.mxu0 0
    %671 = vmatprep.subr.bf16.mxu0 0
    %672 = vmatpush1.bf16.msra.mxu0 0
    %673 = vmatprep.subr.bf16.mxu0 0
    %674 = vmatpush1.bf16.msra.mxu0 0
    %675 = vmatprep.subr.bf16.mxu0 0
    %676 = vmatpush1.bf16.msra.mxu0 0
    %677 = vmatprep.subr.bf16.mxu0 0
    %678 = vmatpush1.bf16.msra.mxu0 0
    %679 = vmatprep.subr.bf16.mxu0 0
    %680 = vmatpush1.bf16.msra.mxu0 0
    %681 = vmatprep.subr.bf16.mxu0 0
    %682 = vmatpush1.bf16.msra.mxu0 0
    %683 = vmatprep.subr.bf16.mxu0 0
    %684 = vmatpush1.bf16.msra.mxu0 0
    %685 = vmatprep.subr.bf16.mxu0 0
    %686 = vmatpush1.bf16.msra.mxu0 0
    %687 = vmatprep.subr.bf16.mxu0 0
    %688 = vmatpush1.bf16.msra.mxu0 0
    %689 = vmatprep.mubr.bf16.mxu0 0
    %690 = vmatmul.mubr.bf16.gmra.mrb[0].mxu0 %v241
    %v691 = vpop.f32.mrb[0].mxu0
    %v692 = vadd.f32 0.0, %v691
    %v693 = vpop.f32.mrb[0].mxu0
    %v694 = vpop.f32.mrb[0].mxu0
    %v695 = vadd.f32 0.0, %v694
    %v696 = vpop.f32.mrb[0].mxu0
    %697 = vdwg.mxu0
    %v698 = vpack.c.bf16 %v654, %v651
    %v699 = vpack.c.bf16 %v695, %v692
    %v700 = vld [vmem:[#allocation2 + $0x40] sm:$0xf]
    %v701 = vld [vmem:[#allocation2 + $0x44] sm:$0xf]
    %v702 = vld [vmem:[#allocation2 + $0x48] sm:$0xf]
    %v703 = vld [vmem:[#allocation2 + $0x4c] sm:$0xf]
    %v708 = vunpack.c.l.b16 %v700
    %v709 = vunpack.c.l.b16 %v701
    %v710 = vunpack.c.l.b16 %v702
    %v711 = vunpack.c.l.b16 %v703
    %v712 = vpack.c.b16 %v709, %v708
    %v713 = vpack.c.b16 %v711, %v710
    %v717 = vsel %vm82, %v698, 0
    %v720 = vsel %vm82, %v699, 0
    %722 = vmatprep.subr.bf16.mxu0 0
    %723 = vmatpush1.bf16.msra.mxu0 %v712
    %724 = vmatprep.subr.bf16.mxu0 0
    %725 = vmatpush1.bf16.msra.mxu0 %v713
    %726 = vmatprep.subr.bf16.mxu0 0
    %727 = vmatpush1.bf16.msra.mxu0 0
    %728 = vmatprep.subr.bf16.mxu0 0
    %729 = vmatpush1.bf16.msra.mxu0 0
    %730 = vmatprep.subr.bf16.mxu0 0
    %731 = vmatpush1.bf16.msra.mxu0 0
    %732 = vmatprep.subr.bf16.mxu0 0
    %733 = vmatpush1.bf16.msra.mxu0 0
    %734 = vmatprep.subr.bf16.mxu0 0
    %735 = vmatpush1.bf16.msra.mxu0 0
    %736 = vmatprep.subr.bf16.mxu0 0
    %737 = vmatpush1.bf16.msra.mxu0 0
    %738 = vmatprep.subr.bf16.mxu0 0
    %739 = vmatpush1.bf16.msra.mxu0 0
    %740 = vmatprep.subr.bf16.mxu0 0
    %741 = vmatpush1.bf16.msra.mxu0 0
    %742 = vmatprep.subr.bf16.mxu0 0
    %743 = vmatpush1.bf16.msra.mxu0 0
    %744 = vmatprep.subr.bf16.mxu0 0
    %745 = vmatpush1.bf16.msra.mxu0 0
    %746 = vmatprep.subr.bf16.mxu0 0
    %747 = vmatpush1.bf16.msra.mxu0 0
    %748 = vmatprep.subr.bf16.mxu0 0
    %749 = vmatpush1.bf16.msra.mxu0 0
    %750 = vmatprep.subr.bf16.mxu0 0
    %751 = vmatpush1.bf16.msra.mxu0 0
    %752 = vmatprep.subr.bf16.mxu0 0
    %753 = vmatpush1.bf16.msra.mxu0 0
    %754 = vmatprep.mubr.bf16.mxu0 0
    %755 = vmatmul.mubr.bf16.gmra.mrb[0].mxu0 %v717
    %v756 = vpop.f32.mrb[0].mxu0
    %v757 = vadd.f32 0.0, %v756
    %v758 = vpop.f32.mrb[0].mxu0
    %v759 = vpop.f32.mrb[0].mxu0
    %v760 = vadd.f32 0.0, %v759
    %v761 = vpop.f32.mrb[0].mxu0
    %762 = vmatprep.mubr.bf16.mxu0 0
    %763 = vmatmul.mubr.bf16.gmra.mrb[0].mxu0 %v720
    %v764 = vpop.f32.mrb[0].mxu0
    %v765 = vadd.f32 0.0, %v764
    %v766 = vpop.f32.mrb[0].mxu0
    %v767 = vpop.f32.mrb[0].mxu0
    %v768 = vadd.f32 0.0, %v767
    %v769 = vpop.f32.mrb[0].mxu0
    %770 = vdwg.mxu0
    %v771 = vadd.f32 %v612, %v757
    %v772 = vadd.f32 %v613, %v760
    %v773 = vadd.f32 %v614, %v765
    %v774 = vadd.f32 %v615, %v768
    %v775 = vpack.c.bf16 %v218, %v215
    %v776 = vpack.c.bf16 %v300, %v297
    %v777 = vld [vmem:[#allocation2 + $0x50] sm:$0xf]
    %v778 = vld [vmem:[#allocation2 + $0x54] sm:$0xf]
    %v779 = vld [vmem:[#allocation2 + $0x58] sm:$0xf]
    %v780 = vld [vmem:[#allocation2 + $0x5c] sm:$0xf]
    %v785 = vunpack.c.l.b16 %v777
    %v786 = vunpack.c.l.b16 %v778
    %v787 = vunpack.c.l.b16 %v779
    %v788 = vunpack.c.l.b16 %v780
    %v789 = vpack.c.b16 %v786, %v785
    %v790 = vpack.c.b16 %v788, %v787
    %v794 = vsel %vm82, %v775, 0
    %v797 = vsel %vm82, %v776, 0
    %799 = vmatprep.subr.bf16.mxu0 0
    %800 = vmatpush1.bf16.msra.mxu0 %v789
    %801 = vmatprep.subr.bf16.mxu0 0
    %802 = vmatpush1.bf16.msra.mxu0 %v790
    %803 = vmatprep.subr.bf16.mxu0 0
    %804 = vmatpush1.bf16.msra.mxu0 0
    %805 = vmatprep.subr.bf16.mxu0 0
    %806 = vmatpush1.bf16.msra.mxu0 0
    %807 = vmatprep.subr.bf16.mxu0 0
    %808 = vmatpush1.bf16.msra.mxu0 0
    %809 = vmatprep.subr.bf16.mxu0 0
    %810 = vmatpush1.bf16.msra.mxu0 0
    %811 = vmatprep.subr.bf16.mxu0 0
    %812 = vmatpush1.bf16.msra.mxu0 0
    %813 = vmatprep.subr.bf16.mxu0 0
    %814 = vmatpush1.bf16.msra.mxu0 0
    %815 = vmatprep.subr.bf16.mxu0 0
    %816 = vmatpush1.bf16.msra.mxu0 0
    %817 = vmatprep.subr.bf16.mxu0 0
    %818 = vmatpush1.bf16.msra.mxu0 0
    %819 = vmatprep.subr.bf16.mxu0 0
    %820 = vmatpush1.bf16.msra.mxu0 0
    %821 = vmatprep.subr.bf16.mxu0 0
    %822 = vmatpush1.bf16.msra.mxu0 0
    %823 = vmatprep.subr.bf16.mxu0 0
    %824 = vmatpush1.bf16.msra.mxu0 0
    %825 = vmatprep.subr.bf16.mxu0 0
    %826 = vmatpush1.bf16.msra.mxu0 0
    %827 = vmatprep.subr.bf16.mxu0 0
    %828 = vmatpush1.bf16.msra.mxu0 0
    %829 = vmatprep.subr.bf16.mxu0 0
    %830 = vmatpush1.bf16.msra.mxu0 0
    %831 = vmatprep.mubr.bf16.mxu0 0
    %832 = vmatmul.mubr.bf16.gmra.mrb[0].mxu0 %v794
    %v833 = vpop.f32.mrb[0].mxu0
    %v834 = vadd.f32 0.0, %v833
    %v835 = vpop.f32.mrb[0].mxu0
    %v836 = vpop.f32.mrb[0].mxu0
    %v837 = vadd.f32 0.0, %v836
    %v838 = vpop.f32.mrb[0].mxu0
    %839 = vmatprep.mubr.bf16.mxu0 0
    %840 = vmatmul.mubr.bf16.gmra.mrb[0].mxu0 %v797
    %v841 = vpop.f32.mrb[0].mxu0
    %v842 = vadd.f32 0.0, %v841
    %v843 = vpop.f32.mrb[0].mxu0
    %v844 = vpop.f32.mrb[0].mxu0
    %v845 = vadd.f32 0.0, %v844
    %v846 = vpop.f32.mrb[0].mxu0
    %847 = vdwg.mxu0
    %v848 = vadd.f32 %v771, %v834
    %v849 = vadd.f32 %v772, %v837
    %v850 = vadd.f32 %v773, %v842
    %v851 = vadd.f32 %v774, %v845
    %852 = vmatprep.subr.bf16.mxu0 0
    %853 = vmatpush1.bf16.msra.mxu0 %v775
    %854 = vmatprep.subr.bf16.mxu0 0
    %855 = vmatpush1.bf16.msra.mxu0 0
    %856 = vmatprep.subr.bf16.mxu0 0
    %857 = vmatpush1.bf16.msra.mxu0 0
    %858 = vmatprep.subr.bf16.mxu0 0
    %859 = vmatpush1.bf16.msra.mxu0 0
    %860 = vmatprep.subr.bf16.mxu0 0
    %861 = vmatpush1.bf16.msra.mxu0 0
    %862 = vmatprep.subr.bf16.mxu0 0
    %863 = vmatpush1.bf16.msra.mxu0 0
    %864 = vmatprep.subr.bf16.mxu0 0
    %865 = vmatpush1.bf16.msra.mxu0 0
    %866 = vmatprep.subr.bf16.mxu0 0
    %867 = vmatpush1.bf16.msra.mxu0 0
    %868 = vmatprep.subr.bf16.mxu0 0
    %869 = vmatpush1.bf16.msra.mxu0 0
    %870 = vmatprep.subr.bf16.mxu0 0
    %871 = vmatpush1.bf16.msra.mxu0 0
    %872 = vmatprep.subr.bf16.mxu0 0
    %873 = vmatpush1.bf16.msra.mxu0 0
    %874 = vmatprep.subr.bf16.mxu0 0
    %875 = vmatpush1.bf16.msra.mxu0 0
    %876 = vmatprep.subr.bf16.mxu0 0
    %877 = vmatpush1.bf16.msra.mxu0 0
    %878 = vmatprep.subr.bf16.mxu0 0
    %879 = vmatpush1.bf16.msra.mxu0 0
    %880 = vmatprep.subr.bf16.mxu0 0
    %881 = vmatpush1.bf16.msra.mxu0 0
    %882 = vmatprep.subr.bf16.mxu0 0
    %883 = vmatpush1.bf16.msra.mxu0 0
    %884 = vmatprep.mubr.bf16.mxu0 0
    %885 = vmatmul.mubr.bf16.gmra.mrb[0].mxu0 %v162
    %v886 = vpop.f32.mrb[0].mxu0
    %v887 = vadd.f32 0.0, %v886
    %v888 = vpop.f32.mrb[0].mxu0
    %v889 = vpop.f32.mrb[0].mxu0
    %v890 = vadd.f32 0.0, %v889
    %v891 = vpop.f32.mrb[0].mxu0
    %892 = vdwg.mxu0
    %893 = vmatprep.subr.bf16.mxu0 0
    %894 = vmatpush1.bf16.msra.mxu0 %v776
    %895 = vmatprep.subr.bf16.mxu0 0
    %896 = vmatpush1.bf16.msra.mxu0 0
    %897 = vmatprep.subr.bf16.mxu0 0
    %898 = vmatpush1.bf16.msra.mxu0 0
    %899 = vmatprep.subr.bf16.mxu0 0
    %900 = vmatpush1.bf16.msra.mxu0 0
    %901 = vmatprep.subr.bf16.mxu0 0
    %902 = vmatpush1.bf16.msra.mxu0 0
    %903 = vmatprep.subr.bf16.mxu0 0
    %904 = vmatpush1.bf16.msra.mxu0 0
    %905 = vmatprep.subr.bf16.mxu0 0
    %906 = vmatpush1.bf16.msra.mxu0 0
    %907 = vmatprep.subr.bf16.mxu0 0
    %908 = vmatpush1.bf16.msra.mxu0 0
    %909 = vmatprep.subr.bf16.mxu0 0
    %910 = vmatpush1.bf16.msra.mxu0 0
    %911 = vmatprep.subr.bf16.mxu0 0
    %912 = vmatpush1.bf16.msra.mxu0 0
    %913 = vmatprep.subr.bf16.mxu0 0
    %914 = vmatpush1.bf16.msra.mxu0 0
    %915 = vmatprep.subr.bf16.mxu0 0
    %916 = vmatpush1.bf16.msra.mxu0 0
    %917 = vmatprep.subr.bf16.mxu0 0
    %918 = vmatpush1.bf16.msra.mxu0 0
    %919 = vmatprep.subr.bf16.mxu0 0
    %920 = vmatpush1.bf16.msra.mxu0 0
    %921 = vmatprep.subr.bf16.mxu0 0
    %922 = vmatpush1.bf16.msra.mxu0 0
    %923 = vmatprep.subr.bf16.mxu0 0
    %924 = vmatpush1.bf16.msra.mxu0 0
    %925 = vmatprep.mubr.bf16.mxu0 0
    %926 = vmatmul.mubr.bf16.gmra.mrb[0].mxu0 %v244
    %v927 = vpop.f32.mrb[0].mxu0
    %v928 = vadd.f32 0.0, %v927
    %v929 = vpop.f32.mrb[0].mxu0
    %v930 = vpop.f32.mrb[0].mxu0
    %v931 = vadd.f32 0.0, %v930
    %v932 = vpop.f32.mrb[0].mxu0
    %933 = vdwg.mxu0
    %v934 = vpack.c.bf16 %v890, %v887
    %v935 = vpack.c.bf16 %v931, %v928
    %v936 = vld [vmem:[#allocation2 + $0x60] sm:$0xf]
    %v937 = vld [vmem:[#allocation2 + $0x64] sm:$0xf]
    %v938 = vld [vmem:[#allocation2 + $0x68] sm:$0xf]
    %v939 = vld [vmem:[#allocation2 + $0x6c] sm:$0xf]
    %v944 = vunpack.c.l.b16 %v936
    %v945 = vunpack.c.l.b16 %v937
    %v946 = vunpack.c.l.b16 %v938
    %v947 = vunpack.c.l.b16 %v939
    %v948 = vpack.c.b16 %v945, %v944
    %v949 = vpack.c.b16 %v947, %v946
    %v953 = vsel %vm82, %v934, 0
    %v956 = vsel %vm82, %v935, 0
    %958 = vmatprep.subr.bf16.mxu0 0
    %959 = vmatpush1.bf16.msra.mxu0 %v948
    %960 = vmatprep.subr.bf16.mxu0 0
    %961 = vmatpush1.bf16.msra.mxu0 %v949
    %962 = vmatprep.subr.bf16.mxu0 0
    %963 = vmatpush1.bf16.msra.mxu0 0
    %964 = vmatprep.subr.bf16.mxu0 0
    %965 = vmatpush1.bf16.msra.mxu0 0
    %966 = vmatprep.subr.bf16.mxu0 0
    %967 = vmatpush1.bf16.msra.mxu0 0
    %968 = vmatprep.subr.bf16.mxu0 0
    %969 = vmatpush1.bf16.msra.mxu0 0
    %970 = vmatprep.subr.bf16.mxu0 0
    %971 = vmatpush1.bf16.msra.mxu0 0
    %972 = vmatprep.subr.bf16.mxu0 0
    %973 = vmatpush1.bf16.msra.mxu0 0
    %974 = vmatprep.subr.bf16.mxu0 0
    %975 = vmatpush1.bf16.msra.mxu0 0
    %976 = vmatprep.subr.bf16.mxu0 0
    %977 = vmatpush1.bf16.msra.mxu0 0
    %978 = vmatprep.subr.bf16.mxu0 0
    %979 = vmatpush1.bf16.msra.mxu0 0
    %980 = vmatprep.subr.bf16.mxu0 0
    %981 = vmatpush1.bf16.msra.mxu0 0
    %982 = vmatprep.subr.bf16.mxu0 0
    %983 = vmatpush1.bf16.msra.mxu0 0
    %984 = vmatprep.subr.bf16.mxu0 0
    %985 = vmatpush1.bf16.msra.mxu0 0
    %986 = vmatprep.subr.bf16.mxu0 0
    %987 = vmatpush1.bf16.msra.mxu0 0
    %988 = vmatprep.subr.bf16.mxu0 0
    %989 = vmatpush1.bf16.msra.mxu0 0
    %990 = vmatprep.mubr.bf16.mxu0 0
    %991 = vmatmul.mubr.bf16.gmra.mrb[0].mxu0 %v953
    %v992 = vpop.f32.mrb[0].mxu0
    %v993 = vadd.f32 0.0, %v992
    %v994 = vpop.f32.mrb[0].mxu0
    %v995 = vpop.f32.mrb[0].mxu0
    %v996 = vadd.f32 0.0, %v995
    %v997 = vpop.f32.mrb[0].mxu0
    %998 = vmatprep.mubr.bf16.mxu0 0
    %999 = vmatmul.mubr.bf16.gmra.mrb[0].mxu0 %v956
    %v1000 = vpop.f32.mrb[0].mxu0
    %v1001 = vadd.f32 0.0, %v1000
    %v1002 = vpop.f32.mrb[0].mxu0
    %v1003 = vpop.f32.mrb[0].mxu0
    %v1004 = vadd.f32 0.0, %v1003
    %v1005 = vpop.f32.mrb[0].mxu0
    %1006 = vdwg.mxu0
    %v1007 = vadd.f32 %v848, %v993
    %v1008 = vadd.f32 %v849, %v996
    %v1009 = vadd.f32 %v850, %v1001
    %v1010 = vadd.f32 %v851, %v1004
    %1011 = vst [vmem:[#allocation5] sm:$0xff] %v1007
    %1012 = vst [vmem:[#allocation5 + $0x8] sm:$0xff] %v1008
    %1013 = vst [vmem:[#allocation5 + $0x10] sm:$0xff] %v1009
    %1014 = vst [vmem:[#allocation5 + $0x18] sm:$0xff] %v1010
    // Predicated region
    $region22: #{tpu_custom_call.1} parent=1 // pred_check
      _
    $region23: #{tpu_custom_call.1} parent=1 // pred_check_branch
      %1016 = sbr.rel (0) target = $region25
    $region24: #{tpu_custom_call.1} parent=1 // pred_region
      %s1018 = ssub.s32 512, 512
      %1019 = vsyncadd [#allocation4], %s1018
      %s1020 = sshll.u32 [#allocation5], 4
      %s1021 = int_to_ptr.vmem [resolvable:$true] %s1020
      %1026 = dma.vmem_to_hbm [thread:$0]  %s1021, 512, %s4, [#allocation4], 128, 128, 8
    $region25: #{tpu_custom_call.1} parent=1 // pred_fallthru
      _
    // Predicated region
    $region26: #{tpu_custom_call.1} parent=1 // pred_check
      _
    $region27: #{tpu_custom_call.1} parent=1 // pred_check_branch
      %1028 = sbr.rel (0) target = $region29
    $region28: #{tpu_custom_call.1} parent=1 // pred_region
      %1029 = dma.done [#allocation4], 512
    $region29: #{tpu_custom_call.1} parent=1 // pred_fallthru
      _
    %1030 = vsyncpa [#allocation3], 1
    %1031 = vsyncpa [#allocation4], 1

</llo_original>
